<compile_context>
chip_gen: v5e
topology: v5e:2x2
jax: 0.10.0
libtpu: 0.0.40
codegen_flags: <defaults>
</compile_context>

<pallas_src>
import jax
import jax.numpy as jnp
import numpy as np
from jax.experimental import pallas as pl
from jax.experimental.pallas import tpu as pltpu


# ---------------------------------------------------------------------------
# sizing helpers
# ---------------------------------------------------------------------------
def _round_up(a, b):
    return pl.cdiv(a, b) * b


def _choose_cblk(c_out, cap=256):
    """All channels in one block when small; else a multiple-of-8 divisor <= cap.
    cap=256 fills the 256-wide MXUs on v6e/v7x; on v5e the compiler simply
    splits a 256-row dot into two 128-wide passes (no harm)."""
    if c_out <= cap:
        return c_out
    for cb in range(cap - cap % 8, 7, -8):
        if c_out % cb == 0:
            return cb
    return c_out


def _tpu_vmem_capacity_bytes(default=64 * 1024 * 1024):
    """Per-core VMEM capacity; conservative (v7x) fallback if the query fails."""
    try:
        cap = int(pltpu.get_tpu_info().vmem_capacity_bytes)
        if cap > 0:
            return cap
    except Exception:
        pass
    return default


def _choose_tq(total_pixels, c_in, c_blk, in_bytes, budget_bytes, target=2048):
    """Largest lane tile (multiple of 128) whose VMEM footprint fits the budget.
    Per-lane bytes: double-buffered bf16 input block + assembled halo slab,
    double-buffered f32 output block, and ~10 live (C_blk, TQ) f32 softmax
    temporaries (q, m, s, acc, kv, logit, p, ...)."""
    per_lane = (3 * c_in * in_bytes) + (2 * c_blk * 4) + (10 * c_blk * 4)
    cap = max(128, (budget_bytes // per_lane) // 128 * 128)
    want = max(128, min(target, _round_up(total_pixels, 128)))
    return min(want, cap)


# ---------------------------------------------------------------------------
# Fused kernel: 1x1 projections + rel bias + window softmax + weighted sum
# ---------------------------------------------------------------------------
def fused_attention_conv(x_cat, wq, wkv, rel, *, K, Wp, TQ, halo_pad, C_blk,
                         n_q, vmem_limit_bytes):
    """x_cat: (C_in, Lbuf) bf16 flattened padded input (+halo_pad zero tail)
       wq  : (C_out, C_in)          bf16
       wkv : (n_cblk, 2*C_blk, C_in) bf16 ([wk; wv] per channel block)
       rel : (C_out, KK)            f32 relative-position bias table
       returns (C_out, n_q*TQ) f32."""
    C_in = x_cat.shape[0]
    C_out, KK = rel.shape
    n_cblk = wkv.shape[0]
    Lr = n_q * TQ
    KC = (K // 2) * (Wp + 1)          # centre-window offset: q = wq @ x (unpadded)

    def kernel(x_ref, xhbm_ref, wq_ref, wkv_ref, rel_ref, o_ref,
               xs_ref, halo_ref, sem):
        qi = pl.program_id(0)
        ci = pl.program_id(1)

        # Assemble the halo-extended input slab once per lane tile; the scratch
        # persists and is reused across the inner channel-block axis.
        @pl.when(ci == 0)
        def _():
            start = pl.multiple_of((qi + 1) * TQ, 128)
            cp = pltpu.make_async_copy(
                xhbm_ref.at[:, pl.ds(start, halo_pad)], halo_ref, sem)
            cp.start()
            xs_ref[:, :TQ] = x_ref[...]          # main block copy overlaps the DMA
            cp.wait()
            xs_ref[:, TQ:] = halo_ref[...]

        wq_v = wq_ref[...]                        # (C_blk, C_in)      bf16
        wkv_v = wkv_ref[0]                        # (2*C_blk, C_in)    bf16
        rel_v = rel_ref[...]                      # (C_blk, KK)        f32

        q = jnp.dot(wq_v, xs_ref[:, KC:KC + TQ],
                    preferred_element_type=jnp.float32)               # (C_blk, TQ)

        def window(kk):
            d = (kk // K) * Wp + (kk % K)        # static shift of the flat index
            kv = jnp.dot(wkv_v, xs_ref[:, d:d + TQ],
                         preferred_element_type=jnp.float32)          # (2*C_blk, TQ)
            logit = q * (kv[:C_blk] + rel_v[:, kk:kk + 1])
            return logit, kv[C_blk:]

        # Online softmax over the KK window positions: short unrolled loop of
        # dense (C_blk, TQ) VPU/EUP ops, no cross-lane reductions.
        m, acc = window(0)
        s = jnp.ones_like(m)
        for kk in range(1, KK):
            logit, v_kk = window(kk)
            m_new = jnp.maximum(m, logit)
            alpha = jnp.exp(m - m_new)
            p = jnp.exp(logit - m_new)
            s = s * alpha + p
            acc = acc * alpha + p * v_kk
            m = m_new
        o_ref[...] = (acc * pl.reciprocal(s, approx=True)).astype(o_ref.dtype)

    return pl.pallas_call(
        kernel,
        out_shape=jax.ShapeDtypeStruct((C_out, Lr), jnp.float32),
        grid_spec=pltpu.PrefetchScalarGridSpec(
            num_scalar_prefetch=0,
            grid=(n_q, n_cblk),                  # channel blocks innermost: the
            in_specs=[                           # big x tile is fetched once/qi
                pl.BlockSpec((C_in, TQ), lambda qi, ci: (0, qi)),       # streamed tile
                pl.BlockSpec(memory_space=pl.ANY),                      # same array, raw HBM (halo)
                pl.BlockSpec((C_blk, C_in), lambda qi, ci: (ci, 0)),    # wq
                pl.BlockSpec((1, 2 * C_blk, C_in), lambda qi, ci: (ci, 0, 0)),  # [wk;wv]
                pl.BlockSpec((C_blk, KK), lambda qi, ci: (ci, 0)),      # rel bias
            ],
            out_specs=pl.BlockSpec((C_blk, TQ), lambda qi, ci: (ci, qi)),
            scratch_shapes=[
                pltpu.VMEM((C_in, TQ + halo_pad), x_cat.dtype),   # assembled slab
                pltpu.VMEM((C_in, halo_pad), x_cat.dtype),        # halo landing buf
                pltpu.SemaphoreType.DMA(()),
            ]),
        compiler_params=pltpu.CompilerParams(
            dimension_semantics=("parallel", "arbitrary"),
            vmem_limit_bytes=vmem_limit_bytes),
    )(x_cat, x_cat, wq, wkv, rel)


# ---------------------------------------------------------------------------
# Full AttentionConv forward (layout glue in XLA, all math inside the kernel)
# ---------------------------------------------------------------------------
def attention_conv_forward(x, params, kernel_size, stride=1, padding=0, groups=1,
                           in_dtype=jnp.bfloat16, target_tq=2048):
    B, C_in, H, W = x.shape
    wq, wk, wv = params["wq"], params["wk"], params["wv"]      # (C_out, C_in)
    rel_h, rel_w = params["rel_h"], params["rel_w"]            # (C_out//2, K)
    C_out = wq.shape[0]
    K = kernel_size
    KK = K * K
    assert C_out % groups == 0, "out_channels should be divided by groups."
    # `groups` only regroups channels around a per-channel softmax/elementwise
    # product in the PyTorch forward, so it is mathematically a no-op here.
    assert stride == 1, "AttentionConv.forward only shape-checks with stride=1"
    Hp, Wp = H + 2 * padding, W + 2 * padding
    Ho, Wo = Hp - K + 1, Wp - K + 1
    assert Ho == H and Wo == W, \
        "AttentionConv.forward assumes output spatial == input spatial (padding == K//2)"

    Np = Hp * Wp                      # flattened padded pixels per image
    L = B * Np                        # total flattened padded pixels
    halo = (K - 1) * (Wp + 1)         # max window offset in flat-index space
    halo_pad = max(_round_up(max(halo, 1), 128), 128)

    C_blk = _choose_cblk(C_out)
    n_cblk = C_out // C_blk
    in_bytes = jnp.dtype(in_dtype).itemsize
    vmem_cap = _tpu_vmem_capacity_bytes()
    budget = vmem_cap // 6                               # ~21 MiB on 128 MiB gens, ~10 MiB on v7x
    vmem_limit = int(min(vmem_cap * 3 // 4, 112 * 1024 * 1024))
    TQ = _choose_tq(L, C_in, C_blk, in_bytes, budget, target_tq)
    Lr = _round_up(L, TQ)
    n_q = Lr // TQ
    Lbuf = Lr + halo_pad

    # Single XLA pass over the input: spatial zero-pad, channel-major flatten,
    # zero tail for the last tile's halo, cast to bf16 (halves the HBM read).
    xp = jnp.pad(x, ((0, 0), (0, 0), (padding, padding), (padding, padding)))
    x_cat = xp.transpose(1, 0, 2, 3).reshape(C_in, L)
    x_cat = jnp.pad(x_cat, ((0, 0), (0, Lbuf - L))).astype(in_dtype)

    wq_b = wq.astype(in_dtype)
    wkv_b = jnp.concatenate([wk.reshape(n_cblk, C_blk, C_in),
                             wv.reshape(n_cblk, C_blk, C_in)],
                            axis=1).astype(in_dtype)               # (n_cblk, 2*C_blk, C_in)

    # relative-position bias table (C_out, KK); cat order (rel_h | rel_w),
    # window index kk = ki*K + kj matches torch .unfold(2).unfold(3) flattening.
    rel_h_full = jnp.repeat(rel_h[:, :, None], K, axis=2)          # (C/2, Kh, Kw)
    rel_w_full = jnp.repeat(rel_w[:, None, :], K, axis=1)          # (C/2, Kh, Kw)
    rel_full = (jnp.concatenate([rel_h_full, rel_w_full], axis=0)
                .reshape(C_out, KK).astype(jnp.float32))

    out_all = fused_attention_conv(
        x_cat, wq_b, wkv_b, rel_full,
        K=K, Wp=Wp, TQ=TQ, halo_pad=halo_pad, C_blk=C_blk, n_q=n_q,
        vmem_limit_bytes=vmem_limit)                               # (C_out, Lr)

    # valid outputs live at flat index b*Np + h*Wp + w  (h < H, w < W)
    out = out_all[:, :L].reshape(C_out, B, Hp, Wp)[:, :, :H, :W]
    return out.transpose(1, 0, 2, 3)                               # NCHW


# ---------------------------------------------------------------------------
# Pure-JAX reference (mirrors the PyTorch forward) for correctness check
# ---------------------------------------------------------------------------
def reference_forward(x, params, K, padding):
    B, C_in, H, W = x.shape
    wq, wk, wv = params["wq"], params["wk"], params["wv"]
    rel_h, rel_w = params["rel_h"], params["rel_w"]
    C_out = wq.shape[0]
    xp = jnp.pad(x, ((0, 0), (0, 0), (padding, padding), (padding, padding)))

    def conv(w, t):
        return jnp.einsum("oi,bihw->bohw", w, t)

    q = conv(wq, x)
    k = conv(wk, xp)
    v = conv(wv, xp)

    def unfold(t):  # -> (B, C, H, W, K, K)
        rows = []
        for ki in range(K):
            cols = [t[:, :, ki:ki + H, kj:kj + W] for kj in range(K)]
            rows.append(jnp.stack(cols, axis=-1))
        return jnp.stack(rows, axis=-2)

    ku, vu = unfold(k), unfold(v)
    half = C_out // 2
    ku = jnp.concatenate(
        [ku[:, :half] + rel_h[None, :, None, None, :, None],
         ku[:, half:] + rel_w[None, :, None, None, None, :]], axis=1)
    ku = ku.reshape(B, C_out, H, W, K * K)
    vu = vu.reshape(B, C_out, H, W, K * K)
    logits = q[..., None] * ku
    p = jax.nn.softmax(logits, axis=-1)
    return jnp.sum(p * vu, axis=-1)


if __name__ == "__main__":
    in_channels, out_channels, kernel_size, stride, padding, groups = 4, 8, 3, 1, 1, 1
    B, H, W = 2, 16, 16

    key = jax.random.PRNGKey(0)
    k1, k2, k3, k4, k5, k6 = jax.random.split(key, 6)
    # kaiming_normal_(mode='fan_out', nonlinearity='relu') for 1x1 conv weights
    std = float(np.sqrt(2.0 / out_channels))
    params = {
        "wq": jax.random.normal(k1, (out_channels, in_channels), jnp.float32) * std,
        "wk": jax.random.normal(k2, (out_channels, in_channels), jnp.float32) * std,
        "wv": jax.random.normal(k3, (out_channels, in_channels), jnp.float32) * std,
        "rel_h": jax.random.normal(k4, (out_channels // 2, kernel_size), jnp.float32),
        "rel_w": jax.random.normal(k5, (out_channels // 2, kernel_size), jnp.float32),
    }
    x = jax.random.normal(k6, (B, in_channels, H, W), jnp.float32)

    fwd = jax.jit(lambda xx, pp: attention_conv_forward(
        xx, pp, kernel_size, stride, padding, groups))
    out = jax.block_until_ready(fwd(x, params))

    # The kernel feeds x / wq / wk / wv to the MXU in bf16, so compare against a
    # reference that sees the same bf16-rounded operands (rel bias stays f32).
    # Tolerance also covers the approximate-reciprocal softmax normalisation.
    bf = lambda a: a.astype(jnp.bfloat16).astype(jnp.float32)
    params_q = dict(params)
    for name in ("wq", "wk", "wv"):
        params_q[name] = bf(params[name])
    ref = reference_forward(bf(x), params_q, kernel_size, padding)

    np.testing.assert_allclose(np.asarray(out), np.asarray(ref), rtol=2e-2, atol=2e-2)
    assert out.shape == (B, out_channels, H, W)
    print("KERNEL_OK")
</pallas_src>

<mosaic_0001>
module attributes {stable_mosaic.version = 11 : i64} {
  func.func @kernel(%arg0: i32, %arg1: i32, %arg2: memref<4x768xbf16, #tpu.memory_space<vmem>>, %arg3: memref<4x896xbf16, #tpu.memory_space<any>>, %arg4: memref<8x4xbf16, #tpu.memory_space<vmem>>, %arg5: memref<1x16x4xbf16, #tpu.memory_space<vmem>>, %arg6: memref<8x9xf32, #tpu.memory_space<vmem>>, %arg7: memref<8x768xf32, #tpu.memory_space<vmem>>, %arg8: memref<4x896xbf16, #tpu.memory_space<vmem>>, %arg9: memref<4x128xbf16, #tpu.memory_space<vmem>>, %arg10: memref<!tpu.dma_semaphore, #tpu.memory_space<semaphore_mem>>) attributes {dimension_semantics = [#tpu.dimension_semantics<parallel>, #tpu.dimension_semantics<arbitrary>], iteration_bounds = array<i64: 1, 1>, scalar_prefetch = 0 : i64, scratch_operands = 3 : i64, tpu.core_type = #tpu.core_type<tc>, window_params = [{transform_indices = @transform_0, window_bounds = array<i64: 4, 768>}, {}, {transform_indices = @transform_2, window_bounds = array<i64: 8, 4>}, {transform_indices = @transform_3, window_bounds = array<i64: 1, 16, 4>}, {transform_indices = @transform_4, window_bounds = array<i64: 8, 9>}, {transform_indices = @transform_5, window_bounds = array<i64: 8, 768>}]} {
    %c0_i32 = arith.constant 0 : i32
    %0 = arith.cmpi eq, %arg1, %c0_i32 : i32
    %1 = arith.extui %0 : i1 to i32
    %c0_i32_0 = arith.constant 0 : i32
    %2 = arith.cmpi ne, %1, %c0_i32_0 : i32
    scf.if %2 {
      %c1_i32 = arith.constant 1 : i32
      %165 = arith.addi %arg0, %c1_i32 : i32
      %c768_i32 = arith.constant 768 : i32
      %166 = arith.muli %165, %c768_i32 : i32
      %167 = tpu.assume_multiple %166, 128 : i32
      %c0_i32_31 = arith.constant 0 : i32
      %168 = tpu.memref_slice %arg3[%c0_i32_31, %167] : memref<4x896xbf16, #tpu.memory_space<any>> -> memref<4x128xbf16, #tpu.memory_space<any>>
      tpu.enqueue_dma source(%168 : memref<4x128xbf16, #tpu.memory_space<any>>) target(%arg9 : memref<4x128xbf16, #tpu.memory_space<vmem>>) target_semaphore(%arg10 : memref<!tpu.dma_semaphore, #tpu.memory_space<semaphore_mem>>)
      %c0_32 = arith.constant 0 : index
      %c0_33 = arith.constant 0 : index
      %169 = vector.load %arg2[%c0_32, %c0_33] : memref<4x768xbf16, #tpu.memory_space<vmem>>, vector<4x768xbf16>
      %c0_34 = arith.constant 0 : index
      %c0_35 = arith.constant 0 : index
      %170 = vector.load %arg8[%c0_34, %c0_35] : memref<4x896xbf16, #tpu.memory_space<vmem>>, vector<4x768xbf16>
      tpu.vector_store %arg8[%c0_34, %c0_35], %169 {strides = array<i32>} : memref<4x896xbf16, #tpu.memory_space<vmem>>, vector<4x768xbf16>,
      %c0_i32_36 = arith.constant 0 : i32
      %171 = tpu.memref_slice %arg3[%c0_i32_36, %167] : memref<4x896xbf16, #tpu.memory_space<any>> -> memref<4x128xbf16, #tpu.memory_space<any>>
      tpu.wait_dma2 semaphore(%arg10 : memref<!tpu.dma_semaphore, #tpu.memory_space<semaphore_mem>>) src(%171 : memref<4x128xbf16, #tpu.memory_space<any>>) dst(%arg9 : memref<4x128xbf16, #tpu.memory_space<vmem>>)
      %c0_37 = arith.constant 0 : index
      %c0_38 = arith.constant 0 : index
      %172 = vector.load %arg9[%c0_37, %c0_38] : memref<4x128xbf16, #tpu.memory_space<vmem>>, vector<4x128xbf16>
      %c0_39 = arith.constant 0 : index
      %c768 = arith.constant 768 : index
      %173 = vector.load %arg8[%c0_39, %c768] : memref<4x896xbf16, #tpu.memory_space<vmem>>, vector<4x128xbf16>
      tpu.vector_store %arg8[%c0_39, %c768], %172 {strides = array<i32>} : memref<4x896xbf16, #tpu.memory_space<vmem>>, vector<4x128xbf16>,
    } else {
    }
    %c0 = arith.constant 0 : index
    %c0_1 = arith.constant 0 : index
    %3 = vector.load %arg4[%c0, %c0_1] : memref<8x4xbf16, #tpu.memory_space<vmem>>, vector<8x4xbf16>
    %c0_2 = arith.constant 0 : index
    %c0_3 = arith.constant 0 : index
    %c0_4 = arith.constant 0 : index
    %4 = vector.load %arg5[%c0_2, %c0_3, %c0_4] : memref<1x16x4xbf16, #tpu.memory_space<vmem>>, vector<1x16x4xbf16>
    %5 = vector.shape_cast %4 : vector<1x16x4xbf16> to vector<16x4xbf16>
    %c0_5 = arith.constant 0 : index
    %c0_6 = arith.constant 0 : index
    %6 = vector.load %arg6[%c0_5, %c0_6] : memref<8x9xf32, #tpu.memory_space<vmem>>, vector<8x9xf32>
    %c0_7 = arith.constant 0 : index
    %c19 = arith.constant 19 : index
    %7 = vector.load %arg8[%c0_7, %c19] : memref<4x896xbf16, #tpu.memory_space<vmem>>, vector<4x768xbf16>
    %cst = arith.constant dense<0.000000e+00> : vector<8x768xf32>
    %8 = tpu.matmul %3, %7, %cst {dimension_numbers = #tpu.dot_dimension_numbers<[1], [0], [0], [1], [0, 0, 1, 1], [], []>} : vector<8x4xbf16>, vector<4x768xbf16>, vector<8x768xf32> -> vector<8x768xf32>
    %c0_8 = arith.constant 0 : index
    %c0_9 = arith.constant 0 : index
    %9 = vector.load %arg8[%c0_8, %c0_9] : memref<4x896xbf16, #tpu.memory_space<vmem>>, vector<4x768xbf16>
    %cst_10 = arith.constant dense<0.000000e+00> : vector<16x768xf32>
    %10 = tpu.matmul %5, %9, %cst_10 {dimension_numbers = #tpu.dot_dimension_numbers<[1], [0], [0], [1], [0, 0, 1, 1], [], []>} : vector<16x4xbf16>, vector<4x768xbf16>, vector<16x768xf32> -> vector<16x768xf32>
    %11 = vector.extract_strided_slice %10 {offsets = [0, 0], sizes = [8, 768], strides = [1, 1]} : vector<16x768xf32> to vector<8x768xf32>
    %12 = vector.extract_strided_slice %6 {offsets = [0, 0], sizes = [8, 1], strides = [1, 1]} : vector<8x9xf32> to vector<8x1xf32>
    %13 = vector.broadcast %12 : vector<8x1xf32> to vector<8x768xf32>
    %14 = arith.addf %11, %13 : vector<8x768xf32>
    %15 = arith.mulf %8, %14 : vector<8x768xf32>
    %16 = vector.extract_strided_slice %10 {offsets = [8, 0], sizes = [8, 768], strides = [1, 1]} : vector<16x768xf32> to vector<8x768xf32>
    %cst_11 = arith.constant 1.000000e+00 : f32
    %17 = vector.broadcast %cst_11 : f32 to vector<8x768xf32>
    %c0_12 = arith.constant 0 : index
    %c1 = arith.constant 1 : index
    %18 = vector.load %arg8[%c0_12, %c1] : memref<4x896xbf16, #tpu.memory_space<vmem>>, vector<4x768xbf16>
    %cst_13 = arith.constant dense<0.000000e+00> : vector<16x768xf32>
    %19 = tpu.matmul %5, %18, %cst_13 {dimension_numbers = #tpu.dot_dimension_numbers<[1], [0], [0], [1], [0, 0, 1, 1], [], []>} : vector<16x4xbf16>, vector<4x768xbf16>, vector<16x768xf32> -> vector<16x768xf32>
    %20 = vector.extract_strided_slice %19 {offsets = [0, 0], sizes = [8, 768], strides = [1, 1]} : vector<16x768xf32> to vector<8x768xf32>
    %21 = vector.extract_strided_slice %6 {offsets = [0, 1], sizes = [8, 1], strides = [1, 1]} : vector<8x9xf32> to vector<8x1xf32>
    %22 = vector.broadcast %21 : vector<8x1xf32> to vector<8x768xf32>
    %23 = arith.addf %20, %22 : vector<8x768xf32>
    %24 = arith.mulf %8, %23 : vector<8x768xf32>
    %25 = vector.extract_strided_slice %19 {offsets = [8, 0], sizes = [8, 768], strides = [1, 1]} : vector<16x768xf32> to vector<8x768xf32>
    %26 = arith.maximumf %15, %24 : vector<8x768xf32>
    %27 = arith.subf %15, %26 : vector<8x768xf32>
    %28 = math.exp %27 : vector<8x768xf32>
    %29 = arith.subf %24, %26 : vector<8x768xf32>
    %30 = math.exp %29 : vector<8x768xf32>
    %31 = arith.mulf %17, %28 : vector<8x768xf32>
    %32 = arith.addf %31, %30 : vector<8x768xf32>
    %33 = arith.mulf %16, %28 : vector<8x768xf32>
    %34 = arith.mulf %30, %25 : vector<8x768xf32>
    %35 = arith.addf %33, %34 : vector<8x768xf32>
    %c0_14 = arith.constant 0 : index
    %c2 = arith.constant 2 : index
    %36 = vector.load %arg8[%c0_14, %c2] : memref<4x896xbf16, #tpu.memory_space<vmem>>, vector<4x768xbf16>
    %cst_15 = arith.constant dense<0.000000e+00> : vector<16x768xf32>
    %37 = tpu.matmul %5, %36, %cst_15 {dimension_numbers = #tpu.dot_dimension_numbers<[1], [0], [0], [1], [0, 0, 1, 1], [], []>} : vector<16x4xbf16>, vector<4x768xbf16>, vector<16x768xf32> -> vector<16x768xf32>
    %38 = vector.extract_strided_slice %37 {offsets = [0, 0], sizes = [8, 768], strides = [1, 1]} : vector<16x768xf32> to vector<8x768xf32>
    %39 = vector.extract_strided_slice %6 {offsets = [0, 2], sizes = [8, 1], strides = [1, 1]} : vector<8x9xf32> to vector<8x1xf32>
    %40 = vector.broadcast %39 : vector<8x1xf32> to vector<8x768xf32>
    %41 = arith.addf %38, %40 : vector<8x768xf32>
    %42 = arith.mulf %8, %41 : vector<8x768xf32>
    %43 = vector.extract_strided_slice %37 {offsets = [8, 0], sizes = [8, 768], strides = [1, 1]} : vector<16x768xf32> to vector<8x768xf32>
    %44 = arith.maximumf %26, %42 : vector<8x768xf32>
    %45 = arith.subf %26, %44 : vector<8x768xf32>
    %46 = math.exp %45 : vector<8x768xf32>
    %47 = arith.subf %42, %44 : vector<8x768xf32>
    %48 = math.exp %47 : vector<8x768xf32>
    %49 = arith.mulf %32, %46 : vector<8x768xf32>
    %50 = arith.addf %49, %48 : vector<8x768xf32>
    %51 = arith.mulf %35, %46 : vector<8x768xf32>
    %52 = arith.mulf %48, %43 : vector<8x768xf32>
    %53 = arith.addf %51, %52 : vector<8x768xf32>
    %c0_16 = arith.constant 0 : index
    %c18 = arith.constant 18 : index
    %54 = vector.load %arg8[%c0_16, %c18] : memref<4x896xbf16, #tpu.memory_space<vmem>>, vector<4x768xbf16>
    %cst_17 = arith.constant dense<0.000000e+00> : vector<16x768xf32>
    %55 = tpu.matmul %5, %54, %cst_17 {dimension_numbers = #tpu.dot_dimension_numbers<[1], [0], [0], [1], [0, 0, 1, 1], [], []>} : vector<16x4xbf16>, vector<4x768xbf16>, vector<16x768xf32> -> vector<16x768xf32>
    %56 = vector.extract_strided_slice %55 {offsets = [0, 0], sizes = [8, 768], strides = [1, 1]} : vector<16x768xf32> to vector<8x768xf32>
    %57 = vector.extract_strided_slice %6 {offsets = [0, 3], sizes = [8, 1], strides = [1, 1]} : vector<8x9xf32> to vector<8x1xf32>
    %58 = vector.broadcast %57 : vector<8x1xf32> to vector<8x768xf32>
    %59 = arith.addf %56, %58 : vector<8x768xf32>
    %60 = arith.mulf %8, %59 : vector<8x768xf32>
    %61 = vector.extract_strided_slice %55 {offsets = [8, 0], sizes = [8, 768], strides = [1, 1]} : vector<16x768xf32> to vector<8x768xf32>
    %62 = arith.maximumf %44, %60 : vector<8x768xf32>
    %63 = arith.subf %44, %62 : vector<8x768xf32>
    %64 = math.exp %63 : vector<8x768xf32>
    %65 = arith.subf %60, %62 : vector<8x768xf32>
    %66 = math.exp %65 : vector<8x768xf32>
    %67 = arith.mulf %50, %64 : vector<8x768xf32>
    %68 = arith.addf %67, %66 : vector<8x768xf32>
    %69 = arith.mulf %53, %64 : vector<8x768xf32>
    %70 = arith.mulf %66, %61 : vector<8x768xf32>
    %71 = arith.addf %69, %70 : vector<8x768xf32>
    %c0_18 = arith.constant 0 : index
    %c19_19 = arith.constant 19 : index
    %72 = vector.load %arg8[%c0_18, %c19_19] : memref<4x896xbf16, #tpu.memory_space<vmem>>, vector<4x768xbf16>
    %cst_20 = arith.constant dense<0.000000e+00> : vector<16x768xf32>
    %73 = tpu.matmul %5, %72, %cst_20 {dimension_numbers = #tpu.dot_dimension_numbers<[1], [0], [0], [1], [0, 0, 1, 1], [], []>} : vector<16x4xbf16>, vector<4x768xbf16>, vector<16x768xf32> -> vector<16x768xf32>
    %74 = vector.extract_strided_slice %73 {offsets = [0, 0], sizes = [8, 768], strides = [1, 1]} : vector<16x768xf32> to vector<8x768xf32>
    %75 = vector.extract_strided_slice %6 {offsets = [0, 4], sizes = [8, 1], strides = [1, 1]} : vector<8x9xf32> to vector<8x1xf32>
    %76 = vector.broadcast %75 : vector<8x1xf32> to vector<8x768xf32>
    %77 = arith.addf %74, %76 : vector<8x768xf32>
    %78 = arith.mulf %8, %77 : vector<8x768xf32>
    %79 = vector.extract_strided_slice %73 {offsets = [8, 0], sizes = [8, 768], strides = [1, 1]} : vector<16x768xf32> to vector<8x768xf32>
    %80 = arith.maximumf %62, %78 : vector<8x768xf32>
    %81 = arith.subf %62, %80 : vector<8x768xf32>
    %82 = math.exp %81 : vector<8x768xf32>
    %83 = arith.subf %78, %80 : vector<8x768xf32>
    %84 = math.exp %83 : vector<8x768xf32>
    %85 = arith.mulf %68, %82 : vector<8x768xf32>
    %86 = arith.addf %85, %84 : vector<8x768xf32>
    %87 = arith.mulf %71, %82 : vector<8x768xf32>
    %88 = arith.mulf %84, %79 : vector<8x768xf32>
    %89 = arith.addf %87, %88 : vector<8x768xf32>
    %c0_21 = arith.constant 0 : index
    %c20 = arith.constant 20 : index
    %90 = vector.load %arg8[%c0_21, %c20] : memref<4x896xbf16, #tpu.memory_space<vmem>>, vector<4x768xbf16>
    %cst_22 = arith.constant dense<0.000000e+00> : vector<16x768xf32>
    %91 = tpu.matmul %5, %90, %cst_22 {dimension_numbers = #tpu.dot_dimension_numbers<[1], [0], [0], [1], [0, 0, 1, 1], [], []>} : vector<16x4xbf16>, vector<4x768xbf16>, vector<16x768xf32> -> vector<16x768xf32>
    %92 = vector.extract_strided_slice %91 {offsets = [0, 0], sizes = [8, 768], strides = [1, 1]} : vector<16x768xf32> to vector<8x768xf32>
    %93 = vector.extract_strided_slice %6 {offsets = [0, 5], sizes = [8, 1], strides = [1, 1]} : vector<8x9xf32> to vector<8x1xf32>
    %94 = vector.broadcast %93 : vector<8x1xf32> to vector<8x768xf32>
    %95 = arith.addf %92, %94 : vector<8x768xf32>
    %96 = arith.mulf %8, %95 : vector<8x768xf32>
    %97 = vector.extract_strided_slice %91 {offsets = [8, 0], sizes = [8, 768], strides = [1, 1]} : vector<16x768xf32> to vector<8x768xf32>
    %98 = arith.maximumf %80, %96 : vector<8x768xf32>
    %99 = arith.subf %80, %98 : vector<8x768xf32>
    %100 = math.exp %99 : vector<8x768xf32>
    %101 = arith.subf %96, %98 : vector<8x768xf32>
    %102 = math.exp %101 : vector<8x768xf32>
    %103 = arith.mulf %86, %100 : vector<8x768xf32>
    %104 = arith.addf %103, %102 : vector<8x768xf32>
    %105 = arith.mulf %89, %100 : vector<8x768xf32>
    %106 = arith.mulf %102, %97 : vector<8x768xf32>
    %107 = arith.addf %105, %106 : vector<8x768xf32>
    %c0_23 = arith.constant 0 : index
    %c36 = arith.constant 36 : index
    %108 = vector.load %arg8[%c0_23, %c36] : memref<4x896xbf16, #tpu.memory_space<vmem>>, vector<4x768xbf16>
    %cst_24 = arith.constant dense<0.000000e+00> : vector<16x768xf32>
    %109 = tpu.matmul %5, %108, %cst_24 {dimension_numbers = #tpu.dot_dimension_numbers<[1], [0], [0], [1], [0, 0, 1, 1], [], []>} : vector<16x4xbf16>, vector<4x768xbf16>, vector<16x768xf32> -> vector<16x768xf32>
    %110 = vector.extract_strided_slice %109 {offsets = [0, 0], sizes = [8, 768], strides = [1, 1]} : vector<16x768xf32> to vector<8x768xf32>
    %111 = vector.extract_strided_slice %6 {offsets = [0, 6], sizes = [8, 1], strides = [1, 1]} : vector<8x9xf32> to vector<8x1xf32>
    %112 = vector.broadcast %111 : vector<8x1xf32> to vector<8x768xf32>
    %113 = arith.addf %110, %112 : vector<8x768xf32>
    %114 = arith.mulf %8, %113 : vector<8x768xf32>
    %115 = vector.extract_strided_slice %109 {offsets = [8, 0], sizes = [8, 768], strides = [1, 1]} : vector<16x768xf32> to vector<8x768xf32>
    %116 = arith.maximumf %98, %114 : vector<8x768xf32>
    %117 = arith.subf %98, %116 : vector<8x768xf32>
    %118 = math.exp %117 : vector<8x768xf32>
    %119 = arith.subf %114, %116 : vector<8x768xf32>
    %120 = math.exp %119 : vector<8x768xf32>
    %121 = arith.mulf %104, %118 : vector<8x768xf32>
    %122 = arith.addf %121, %120 : vector<8x768xf32>
    %123 = arith.mulf %107, %118 : vector<8x768xf32>
    %124 = arith.mulf %120, %115 : vector<8x768xf32>
    %125 = arith.addf %123, %124 : vector<8x768xf32>
    %c0_25 = arith.constant 0 : index
    %c37 = arith.constant 37 : index
    %126 = vector.load %arg8[%c0_25, %c37] : memref<4x896xbf16, #tpu.memory_space<vmem>>, vector<4x768xbf16>
    %cst_26 = arith.constant dense<0.000000e+00> : vector<16x768xf32>
    %127 = tpu.matmul %5, %126, %cst_26 {dimension_numbers = #tpu.dot_dimension_numbers<[1], [0], [0], [1], [0, 0, 1, 1], [], []>} : vector<16x4xbf16>, vector<4x768xbf16>, vector<16x768xf32> -> vector<16x768xf32>
    %128 = vector.extract_strided_slice %127 {offsets = [0, 0], sizes = [8, 768], strides = [1, 1]} : vector<16x768xf32> to vector<8x768xf32>
    %129 = vector.extract_strided_slice %6 {offsets = [0, 7], sizes = [8, 1], strides = [1, 1]} : vector<8x9xf32> to vector<8x1xf32>
    %130 = vector.broadcast %129 : vector<8x1xf32> to vector<8x768xf32>
    %131 = arith.addf %128, %130 : vector<8x768xf32>
    %132 = arith.mulf %8, %131 : vector<8x768xf32>
    %133 = vector.extract_strided_slice %127 {offsets = [8, 0], sizes = [8, 768], strides = [1, 1]} : vector<16x768xf32> to vector<8x768xf32>
    %134 = arith.maximumf %116, %132 : vector<8x768xf32>
    %135 = arith.subf %116, %134 : vector<8x768xf32>
    %136 = math.exp %135 : vector<8x768xf32>
    %137 = arith.subf %132, %134 : vector<8x768xf32>
    %138 = math.exp %137 : vector<8x768xf32>
    %139 = arith.mulf %122, %136 : vector<8x768xf32>
    %140 = arith.addf %139, %138 : vector<8x768xf32>
    %141 = arith.mulf %125, %136 : vector<8x768xf32>
    %142 = arith.mulf %138, %133 : vector<8x768xf32>
    %143 = arith.addf %141, %142 : vector<8x768xf32>
    %c0_27 = arith.constant 0 : index
    %c38 = arith.constant 38 : index
    %144 = vector.load %arg8[%c0_27, %c38] : memref<4x896xbf16, #tpu.memory_space<vmem>>, vector<4x768xbf16>
    %cst_28 = arith.constant dense<0.000000e+00> : vector<16x768xf32>
    %145 = tpu.matmul %5, %144, %cst_28 {dimension_numbers = #tpu.dot_dimension_numbers<[1], [0], [0], [1], [0, 0, 1, 1], [], []>} : vector<16x4xbf16>, vector<4x768xbf16>, vector<16x768xf32> -> vector<16x768xf32>
    %146 = vector.extract_strided_slice %145 {offsets = [0, 0], sizes = [8, 768], strides = [1, 1]} : vector<16x768xf32> to vector<8x768xf32>
    %147 = vector.extract_strided_slice %6 {offsets = [0, 8], sizes = [8, 1], strides = [1, 1]} : vector<8x9xf32> to vector<8x1xf32>
    %148 = vector.broadcast %147 : vector<8x1xf32> to vector<8x768xf32>
    %149 = arith.addf %146, %148 : vector<8x768xf32>
    %150 = arith.mulf %8, %149 : vector<8x768xf32>
    %151 = vector.extract_strided_slice %145 {offsets = [8, 0], sizes = [8, 768], strides = [1, 1]} : vector<16x768xf32> to vector<8x768xf32>
    %152 = arith.maximumf %134, %150 : vector<8x768xf32>
    %153 = arith.subf %134, %152 : vector<8x768xf32>
    %154 = math.exp %153 : vector<8x768xf32>
    %155 = arith.subf %150, %152 : vector<8x768xf32>
    %156 = math.exp %155 : vector<8x768xf32>
    %157 = arith.mulf %140, %154 : vector<8x768xf32>
    %158 = arith.addf %157, %156 : vector<8x768xf32>
    %159 = arith.mulf %143, %154 : vector<8x768xf32>
    %160 = arith.mulf %156, %151 : vector<8x768xf32>
    %161 = arith.addf %159, %160 : vector<8x768xf32>
    %162 = tpu.reciprocal %158 {approx = true} : vector<8x768xf32> -> vector<8x768xf32>
    %163 = arith.mulf %161, %162 : vector<8x768xf32>
    %c0_29 = arith.constant 0 : index
    %c0_30 = arith.constant 0 : index
    %164 = vector.load %arg7[%c0_29, %c0_30] : memref<8x768xf32, #tpu.memory_space<vmem>>, vector<8x768xf32>
    tpu.vector_store %arg7[%c0_29, %c0_30], %163 {strides = array<i32>} : memref<8x768xf32, #tpu.memory_space<vmem>>, vector<8x768xf32>,
    return
  }
  func.func @transform_0(%arg0: i32, %arg1: i32) -> (i32, i32) {
    %c0_i32 = arith.constant 0 : i32
    %c0_i32_0 = arith.constant 0 : i32
    return %c0_i32, %arg0 : i32, i32
  }
  func.func @transform_2(%arg0: i32, %arg1: i32) -> (i32, i32) {
    %c0_i32 = arith.constant 0 : i32
    %c0_i32_0 = arith.constant 0 : i32
    return %arg1, %c0_i32 : i32, i32
  }
  func.func @transform_3(%arg0: i32, %arg1: i32) -> (i32, i32, i32) {
    %c0_i32 = arith.constant 0 : i32
    %c0_i32_0 = arith.constant 0 : i32
    %c0_i32_1 = arith.constant 0 : i32
    return %arg1, %c0_i32, %c0_i32_0 : i32, i32, i32
  }
  func.func @transform_4(%arg0: i32, %arg1: i32) -> (i32, i32) {
    %c0_i32 = arith.constant 0 : i32
    %c0_i32_0 = arith.constant 0 : i32
    return %arg1, %c0_i32 : i32, i32
  }
  func.func @transform_5(%arg0: i32, %arg1: i32) -> (i32, i32) {
    %c0_i32 = arith.constant 0 : i32
    return %arg1, %arg0 : i32, i32
  }
}

</mosaic_0001>

<llo_original>
// kernel: _lambda_.1
$region0: #{_lambda_.1}
  #allocation0 [shape = 'u32[]', space=smem, size = 0x4, offset = 0x4, fixed_abs, tag = 'smem constant byte address 0x4 - core index']
  #allocation1 [shape = 'u32[72,128]{1,0:T(1,128)}', space=vmem, size = 0x9000, scoped, tag = 'internal scratch']
  #allocation2 [shape = 'bf16[4,896]{1,0:T(4,128)(2,1)}', space=vmem, size = 0x1c00, scoped, tag = 'scratch operand']
  #allocation3 [shape = 'bf16[4,128]{1,0:T(4,128)(2,1)}', space=vmem, size = 0x400, scoped, tag = 'scratch operand']
  #allocation4 [shape = 's32[1]{0}', space=sflag, size = 0x4, scoped, tag = 'scratch operand']
  #allocation5 [shape = 's32[]', space=sflag, size = 0x4, offset = 0, fixed_abs, tag = 'sflag constant byte address 0x0 - dummy sync flag']
  %s0 = inlined_call_operand.vmem [shape: bf16[4,896], index: 0, kind: input, shape index: {}, may-alias: {0,1}]
  %s1 = inlined_call_operand.vmem [shape: bf16[4,896], index: 1, kind: input, shape index: {}, may-alias: {0,1}]
  %s2 = inlined_call_operand.vmem [shape: bf16[8,4], index: 2, kind: input, shape index: {}]
  %s3 = inlined_call_operand.vmem [shape: bf16[1,16,4], index: 3, kind: input, shape index: {}]
  %s4 = inlined_call_operand.vmem [shape: f32[8,9], index: 4, kind: input, shape index: {}]
  %s5 = inlined_call_operand.vmem [shape: f32[8,768], index: 5, kind: output, shape index: {}]
  %s6 = sld [smem:[#allocation0]]
  $region60: #{_lambda_.1} parent=0
    _
  %s8 = ssub.s32 1, %s6
  %s9 = scalar_select 0, %s8, %s6
  // Predicated region
  $region2: #{_lambda_.1} parent=0 // pred_check
    _
  $region3: #{_lambda_.1} parent=0 // pred_check_branch
    %11 = sbr.rel (0) target = $region5
  $region4: #{_lambda_.1} parent=0 // pred_region
    _
  $region5: #{_lambda_.1} parent=0 // pred_fallthru
    _
  // Predicated region
  $region6: #{_lambda_.1} parent=0 // pred_check
    _
  $region7: #{_lambda_.1} parent=0 // pred_check_branch
    %13 = sbr.rel (0) target = $region9
  $region8: #{_lambda_.1} parent=0 // pred_region
    _
  $region9: #{_lambda_.1} parent=0 // pred_fallthru
    _
  // Predicated region
  $region10: #{_lambda_.1} parent=0 // pred_check
    _
  $region11: #{_lambda_.1} parent=0 // pred_check_branch
    %15 = sbr.rel (0) target = $region13
  $region12: #{_lambda_.1} parent=0 // pred_region
    _
  $region13: #{_lambda_.1} parent=0 // pred_fallthru
    _
  // Predicated region
  $region14: #{_lambda_.1} parent=0 // pred_check
    _
  $region15: #{_lambda_.1} parent=0 // pred_check_branch
    %17 = sbr.rel (0) target = $region17
  $region16: #{_lambda_.1} parent=0 // pred_region
    _
  $region17: #{_lambda_.1} parent=0 // pred_fallthru
    _
  %p19 = scmp.eq.s32.totalorder 0, 0
  // Predicated region
  $region18: #{_lambda_.1} parent=0 // pred_check
    %p20 = pneg %p19
  $region19: #{_lambda_.1} parent=0 // pred_check_branch
    %22 = sbr.rel (%p20) target = $region21
  $region20: #{_lambda_.1} parent=0 // pred_region
    %s23 = sadd.s32 0, 1
    %s24 = smul.u32 %s23, 768
    %s25 = sshra.s32 %s24, 7
    %s26 = sand.u32 %s24, 127
    %s27 = smul.addr %s25, 2
    %s28 = scalar_lea.vmem %s1, %s27
    // Predicated region
    $region22: #{_lambda_.1} parent=20 // pred_check
      _
    $region23: #{_lambda_.1} parent=20 // pred_check_branch
      %30 = sbr.rel target = $region25
    $region24: #{_lambda_.1} parent=20 // pred_region
      // Predicated region
      $region37: #{_lambda_.1} parent=24 // pred_check
        _
      $region38: #{_lambda_.1} parent=24 // pred_check_branch
        %46 = sbr.rel (0) target = $region40
      $region39: #{_lambda_.1} parent=24 // pred_region
        %s48 = ssub.s32 4, 1
        loop: start=0, step=1, limit=1
        $region41: #{_lambda_.1} parent=39 // loop_pre_header
          _
        $region42: #{_lambda_.1} parent=39 // loop_header
          %s50 = sphi 0, %s54
          %p51 = scmp.ge.s32.totalorder %s50, 1
          %s55 = sphi %s28, %s28
          %s56 = sphi [#allocation3], [#allocation3]
        $region43: #{_lambda_.1} parent=39 // loop_header_branch
          %53 = sbr.rel (%p51) target = $region47
        $region44: #{_lambda_.1} parent=39 // loop_body
          %v57 = vld [vmem:[%s55] sm:%s48]
          %58 = vst [vmem:[%s56] sm:%s48] %v57
        $region45: #{_lambda_.1} parent=39 // loop_footer
          %s54 = sadd.s32 1, %s50
        $region46: #{_lambda_.1} parent=39 // loop_footer_branch
          %49 = sbr.rel target = $region42
        $region47: #{_lambda_.1} parent=39 // loop_exit
          _
      $region40: #{_lambda_.1} parent=24 // pred_fallthru
        _
    $region25: #{_lambda_.1} parent=20 // pred_fallthru
      _
    // Predicated region
    $region26: #{_lambda_.1} parent=20 // pred_check
      _
    $region27: #{_lambda_.1} parent=20 // pred_check_branch
      %32 = sbr.rel (0) target = $region29
    $region28: #{_lambda_.1} parent=20 // pred_region
      %s34 = ssub.s32 4, 1
      loop: start=0, step=1, limit=1
      $region30: #{_lambda_.1} parent=28 // loop_pre_header
        _
      $region31: #{_lambda_.1} parent=28 // loop_header
        %s36 = sphi 0, %s40
        %p37 = scmp.ge.s32.totalorder %s36, 1
        %s41 = sphi %s28, %s28
        %s42 = sphi [#allocation3], [#allocation3]
      $region32: #{_lambda_.1} parent=28 // loop_header_branch
        %39 = sbr.rel (%p37) target = $region36
      $region33: #{_lambda_.1} parent=28 // loop_body
        %v43 = vld [vmem:[%s41] sm:%s34]
        %44 = vst [vmem:[%s42] sm:%s34] %v43
      $region34: #{_lambda_.1} parent=28 // loop_footer
        %s40 = sadd.s32 1, %s36
      $region35: #{_lambda_.1} parent=28 // loop_footer_branch
        %35 = sbr.rel target = $region31
      $region36: #{_lambda_.1} parent=28 // loop_exit
        _
    $region29: #{_lambda_.1} parent=20 // pred_fallthru
      _
    // Predicated region
    $region48: #{_lambda_.1} parent=20 // pred_check
      _
    $region49: #{_lambda_.1} parent=20 // pred_check_branch
      %61 = sbr.rel (0) target = $region51
    $region50: #{_lambda_.1} parent=20 // pred_region
      %62 = vsyncadd [#allocation4], 32
    $region51: #{_lambda_.1} parent=20 // pred_fallthru
      _
    %v63 = vld [vmem:[%s0] sm:$0xff]
    %v64 = vld [vmem:[%s0 + $0x8] sm:$0xf]
    %65 = vst [vmem:[#allocation2] sm:$0xff] %v63
    %66 = vst [vmem:[#allocation2 + $0x8] sm:$0xf] %v64
    %s67 = smul.u32 2, 1
    %s68 = smul.u32 %s67, 1
    %s69 = sshll.u32 %s68, 4
    %70 = dma.done [#allocation4], %s69
    %v71 = vld [vmem:[#allocation3] sm:$0x3]
    %72 = vst [vmem:[#allocation2 + $0xc] sm:$0x3] %v71
  $region21: #{_lambda_.1} parent=0 // pred_fallthru
    _
  %v73 = vld [vmem:[%s2] sm:$0xf]
  %v74 = vld [vmem:[%s3] sm:$0xf]
  %v75 = vld [vmem:[%s3 + $0x4] sm:$0xf]
  %v76 = vld [vmem:[%s4] sm:$0xff]
  %v77 = vld [vmem:[#allocation2] sm:$0xff]
  %v78 = vld [vmem:[#allocation2 + $0x8] sm:$0x3f]
  %80 = vst [vmem:[#allocation1] ss:$4 sm:$0xff] %v77
  %s82 = scalar_lea.vmem [#allocation1], 32
  %83 = vst [vmem:[%s82] ss:$4 sm:$0xff] %v78
  %v84 = vld.sshfl [vmem:[#allocation1] sm:$0xff pattern:$0x73625140]
  %v86 = vld.sshfl [vmem:[#allocation1 + $0x8] sm:$0xff pattern:$0x73625140]
  %v88 = vld.sshfl [vmem:[#allocation1 + $0x10] sm:$0xff pattern:$0x73625140]
  %v90 = vld.sshfl [vmem:[#allocation1 + $0x18] sm:$0xff pattern:$0x73625140]
  %v92 = vld.sshfl [vmem:[#allocation1 + $0x20] sm:$0xff pattern:$0x73625140]
  %v94 = vld.sshfl [vmem:[#allocation1 + $0x28] sm:$0xff pattern:$0x73625140]
  %v96 = vld.sshfl [vmem:[#allocation1 + $0x30] sm:$0xff pattern:$0x73625140]
  %98 = vrot.lane.b32.xlu0 %v84, 109
  %v99 = vpop.permute.xlu0 %98
  %100 = vrot.lane.b32.xlu0 %v86, 109
  %v101 = vpop.permute.xlu0 %100
  %102 = vrot.lane.b32.xlu0 %v88, 109
  %v103 = vpop.permute.xlu0 %102
  %104 = vrot.lane.b32.xlu0 %v90, 109
  %v105 = vpop.permute.xlu0 %104
  %106 = vrot.lane.b32.xlu0 %v92, 109
  %v107 = vpop.permute.xlu0 %106
  %108 = vrot.lane.b32.xlu0 %v94, 109
  %v109 = vpop.permute.xlu0 %108
  %110 = vrot.lane.b32.xlu0 %v96, 109
  %v111 = vpop.permute.xlu0 %110
  %vm112 = vcmask 891904
  %v113 = vsel %vm112, %v99, %v101
  %v114 = vsel %vm112, %v101, %v103
  %v115 = vsel %vm112, %v103, %v105
  %v116 = vsel %vm112, %v105, %v107
  %v117 = vsel %vm112, %v107, %v109
  %v118 = vsel %vm112, %v109, %v111
  %vm119 = vcmask 31744
  %v121 = vsel %vm119, %v73, 0
  %vm123 = vcmask 1041408
  %v125 = vsel %vm123, %v113, 0
  %v128 = vsel %vm123, %v114, 0
  %v131 = vsel %vm123, %v115, 0
  %v134 = vsel %vm123, %v116, 0
  %v137 = vsel %vm123, %v117, 0
  %v140 = vsel %vm123, %v118, 0
  %142 = vmatpush.bf16.msra.mxu0 0
  %143 = vmatpush.bf16.msra.mxu0 0
  %144 = vmatpush.bf16.msra.mxu0 0
  %145 = vmatpush.bf16.msra.mxu0 0
  %146 = vmatpush.bf16.msra.mxu0 0
  %147 = vmatpush.bf16.msra.mxu0 0
  %148 = vmatpush.bf16.msra.mxu0 0
  %149 = vmatpush.bf16.msra.mxu0 %v125
  %150 = vmatmul.bf16.gmra.mxu0 %v121
  %v151 = vpop.f32.mrf.mxu0
  %v152 = vadd.f32 0.0, %v151
  %v153 = vpop.f32.mrf.mxu0
  %154 = vdwg.mxu0
  %155 = vmatpush.bf16.msra.mxu0 0
  %156 = vmatpush.bf16.msra.mxu0 0
  %157 = vmatpush.bf16.msra.mxu0 0
  %158 = vmatpush.bf16.msra.mxu0 0
  %159 = vmatpush.bf16.msra.mxu0 0
  %160 = vmatpush.bf16.msra.mxu0 0
  %161 = vmatpush.bf16.msra.mxu0 0
  %162 = vmatpush.bf16.msra.mxu0 %v128
  %163 = vmatmul.bf16.gmra.mxu0 %v121
  %v164 = vpop.f32.mrf.mxu0
  %v165 = vadd.f32 0.0, %v164
  %v166 = vpop.f32.mrf.mxu0
  %167 = vdwg.mxu0
  %168 = vmatpush.bf16.msra.mxu0 0
  %169 = vmatpush.bf16.msra.mxu0 0
  %170 = vmatpush.bf16.msra.mxu0 0
  %171 = vmatpush.bf16.msra.mxu0 0
  %172 = vmatpush.bf16.msra.mxu0 0
  %173 = vmatpush.bf16.msra.mxu0 0
  %174 = vmatpush.bf16.msra.mxu0 0
  %175 = vmatpush.bf16.msra.mxu0 %v131
  %176 = vmatmul.bf16.gmra.mxu0 %v121
  %v177 = vpop.f32.mrf.mxu0
  %v178 = vadd.f32 0.0, %v177
  %v179 = vpop.f32.mrf.mxu0
  %180 = vdwg.mxu0
  %181 = vmatpush.bf16.msra.mxu0 0
  %182 = vmatpush.bf16.msra.mxu0 0
  %183 = vmatpush.bf16.msra.mxu0 0
  %184 = vmatpush.bf16.msra.mxu0 0
  %185 = vmatpush.bf16.msra.mxu0 0
  %186 = vmatpush.bf16.msra.mxu0 0
  %187 = vmatpush.bf16.msra.mxu0 0
  %188 = vmatpush.bf16.msra.mxu0 %v134
  %189 = vmatmul.bf16.gmra.mxu0 %v121
  %v190 = vpop.f32.mrf.mxu0
  %v191 = vadd.f32 0.0, %v190
  %v192 = vpop.f32.mrf.mxu0
  %193 = vdwg.mxu0
  %194 = vmatpush.bf16.msra.mxu0 0
  %195 = vmatpush.bf16.msra.mxu0 0
  %196 = vmatpush.bf16.msra.mxu0 0
  %197 = vmatpush.bf16.msra.mxu0 0
  %198 = vmatpush.bf16.msra.mxu0 0
  %199 = vmatpush.bf16.msra.mxu0 0
  %200 = vmatpush.bf16.msra.mxu0 0
  %201 = vmatpush.bf16.msra.mxu0 %v137
  %202 = vmatmul.bf16.gmra.mxu0 %v121
  %v203 = vpop.f32.mrf.mxu0
  %v204 = vadd.f32 0.0, %v203
  %v205 = vpop.f32.mrf.mxu0
  %206 = vdwg.mxu0
  %207 = vmatpush.bf16.msra.mxu0 0
  %208 = vmatpush.bf16.msra.mxu0 0
  %209 = vmatpush.bf16.msra.mxu0 0
  %210 = vmatpush.bf16.msra.mxu0 0
  %211 = vmatpush.bf16.msra.mxu0 0
  %212 = vmatpush.bf16.msra.mxu0 0
  %213 = vmatpush.bf16.msra.mxu0 0
  %214 = vmatpush.bf16.msra.mxu0 %v140
  %215 = vmatmul.bf16.gmra.mxu0 %v121
  %v216 = vpop.f32.mrf.mxu0
  %v217 = vadd.f32 0.0, %v216
  %v218 = vpop.f32.mrf.mxu0
  %219 = vdwg.mxu0
  %v220 = vld [vmem:[#allocation2] sm:$0xff]
  %v221 = vld [vmem:[#allocation2 + $0x8] sm:$0xf]
  %v224 = vunpack.c.l.b16 %v74
  %v225 = vunpack.c.l.b16 %v75
  %v226 = vpack.c.b16 %v225, %v224
  %228 = vst [vmem:[#allocation1] ss:$4 sm:$0xff] %v220
  %s230 = scalar_lea.vmem [#allocation1], 32
  %231 = vst [vmem:[%s230] ss:$4 sm:$0xff] %v221
  %v232 = vld.sshfl [vmem:[#allocation1] sm:$0xff pattern:$0x73625140]
  %v233 = vld.sshfl [vmem:[#allocation1 + $0x8] sm:$0xff pattern:$0x73625140]
  %v234 = vld.sshfl [vmem:[#allocation1 + $0x10] sm:$0xff pattern:$0x73625140]
  %v235 = vld.sshfl [vmem:[#allocation1 + $0x18] sm:$0xff pattern:$0x73625140]
  %v236 = vld.sshfl [vmem:[#allocation1 + $0x20] sm:$0xff pattern:$0x73625140]
  %v237 = vld.sshfl [vmem:[#allocation1 + $0x28] sm:$0xff pattern:$0x73625140]
  %v239 = vsel %vm119, %v226, 0
  %v241 = vsel %vm123, %v232, 0
  %v243 = vsel %vm123, %v233, 0
  %v245 = vsel %vm123, %v234, 0
  %v247 = vsel %vm123, %v235, 0
  %v249 = vsel %vm123, %v236, 0
  %v251 = vsel %vm123, %v237, 0
  %253 = vmatpush.bf16.msra.mxu0 0
  %254 = vmatpush.bf16.msra.mxu0 0
  %255 = vmatpush.bf16.msra.mxu0 0
  %256 = vmatpush.bf16.msra.mxu0 0
  %257 = vmatpush.bf16.msra.mxu0 0
  %258 = vmatpush.bf16.msra.mxu0 0
  %259 = vmatpush.bf16.msra.mxu0 0
  %260 = vmatpush.bf16.msra.mxu0 %v241
  %261 = vmatmul.bf16.gmra.mxu0 %v239
  %v262 = vpop.f32.mrf.mxu0
  %v263 = vadd.f32 0.0, %v262
  %v264 = vpop.f32.mrf.mxu0
  %v265 = vadd.f32 0.0, %v264
  %266 = vdwg.mxu0
  %267 = vmatpush.bf16.msra.mxu0 0
  %268 = vmatpush.bf16.msra.mxu0 0
  %269 = vmatpush.bf16.msra.mxu0 0
  %270 = vmatpush.bf16.msra.mxu0 0
  %271 = vmatpush.bf16.msra.mxu0 0
  %272 = vmatpush.bf16.msra.mxu0 0
  %273 = vmatpush.bf16.msra.mxu0 0
  %274 = vmatpush.bf16.msra.mxu0 %v243
  %275 = vmatmul.bf16.gmra.mxu0 %v239
  %v276 = vpop.f32.mrf.mxu0
  %v277 = vadd.f32 0.0, %v276
  %v278 = vpop.f32.mrf.mxu0
  %v279 = vadd.f32 0.0, %v278
  %280 = vdwg.mxu0
  %281 = vmatpush.bf16.msra.mxu0 0
  %282 = vmatpush.bf16.msra.mxu0 0
  %283 = vmatpush.bf16.msra.mxu0 0
  %284 = vmatpush.bf16.msra.mxu0 0
  %285 = vmatpush.bf16.msra.mxu0 0
  %286 = vmatpush.bf16.msra.mxu0 0
  %287 = vmatpush.bf16.msra.mxu0 0
  %288 = vmatpush.bf16.msra.mxu0 %v245
  %289 = vmatmul.bf16.gmra.mxu0 %v239
  %v290 = vpop.f32.mrf.mxu0
  %v291 = vadd.f32 0.0, %v290
  %v292 = vpop.f32.mrf.mxu0
  %v293 = vadd.f32 0.0, %v292
  %294 = vdwg.mxu0
  %295 = vmatpush.bf16.msra.mxu0 0
  %296 = vmatpush.bf16.msra.mxu0 0
  %297 = vmatpush.bf16.msra.mxu0 0
  %298 = vmatpush.bf16.msra.mxu0 0
  %299 = vmatpush.bf16.msra.mxu0 0
  %300 = vmatpush.bf16.msra.mxu0 0
  %301 = vmatpush.bf16.msra.mxu0 0
  %302 = vmatpush.bf16.msra.mxu0 %v247
  %303 = vmatmul.bf16.gmra.mxu0 %v239
  %v304 = vpop.f32.mrf.mxu0
  %v305 = vadd.f32 0.0, %v304
  %v306 = vpop.f32.mrf.mxu0
  %v307 = vadd.f32 0.0, %v306
  %308 = vdwg.mxu0
  %309 = vmatpush.bf16.msra.mxu0 0
  %310 = vmatpush.bf16.msra.mxu0 0
  %311 = vmatpush.bf16.msra.mxu0 0
  %312 = vmatpush.bf16.msra.mxu0 0
  %313 = vmatpush.bf16.msra.mxu0 0
  %314 = vmatpush.bf16.msra.mxu0 0
  %315 = vmatpush.bf16.msra.mxu0 0
  %316 = vmatpush.bf16.msra.mxu0 %v249
  %317 = vmatmul.bf16.gmra.mxu0 %v239
  %v318 = vpop.f32.mrf.mxu0
  %v319 = vadd.f32 0.0, %v318
  %v320 = vpop.f32.mrf.mxu0
  %v321 = vadd.f32 0.0, %v320
  %322 = vdwg.mxu0
  %323 = vmatpush.bf16.msra.mxu0 0
  %324 = vmatpush.bf16.msra.mxu0 0
  %325 = vmatpush.bf16.msra.mxu0 0
  %326 = vmatpush.bf16.msra.mxu0 0
  %327 = vmatpush.bf16.msra.mxu0 0
  %328 = vmatpush.bf16.msra.mxu0 0
  %329 = vmatpush.bf16.msra.mxu0 0
  %330 = vmatpush.bf16.msra.mxu0 %v251
  %331 = vmatmul.bf16.gmra.mxu0 %v239
  %v332 = vpop.f32.mrf.mxu0
  %v333 = vadd.f32 0.0, %v332
  %v334 = vpop.f32.mrf.mxu0
  %v335 = vadd.f32 0.0, %v334
  %336 = vdwg.mxu0
  %338 = vset.pattern.permute.xlu0 0
  %339 = vperm.xlu0 %338, %v76
  %v340 = vpop.permute.xlu0 %339
  %v342 = vadd.f32 %v263, %v340
  %v343 = vadd.f32 %v277, %v340
  %v344 = vadd.f32 %v291, %v340
  %v345 = vadd.f32 %v305, %v340
  %v346 = vadd.f32 %v319, %v340
  %v347 = vadd.f32 %v333, %v340
  %v348 = vmul.f32 %v152, %v342
  %v349 = vmul.f32 %v165, %v343
  %v350 = vmul.f32 %v178, %v344
  %v351 = vmul.f32 %v191, %v345
  %v352 = vmul.f32 %v204, %v346
  %v353 = vmul.f32 %v217, %v347
  %v354 = vld [vmem:[#allocation2] sm:$0xff]
  %v355 = vld [vmem:[#allocation2 + $0x8] sm:$0x3f]
  %357 = vst [vmem:[#allocation1] ss:$4 sm:$0xff] %v354
  %s359 = scalar_lea.vmem [#allocation1], 32
  %360 = vst [vmem:[%s359] ss:$4 sm:$0xff] %v355
  %v361 = vld.sshfl [vmem:[#allocation1] sm:$0xff pattern:$0x73625140]
  %v363 = vld.sshfl [vmem:[#allocation1 + $0x8] sm:$0xff pattern:$0x73625140]
  %v365 = vld.sshfl [vmem:[#allocation1 + $0x10] sm:$0xff pattern:$0x73625140]
  %v367 = vld.sshfl [vmem:[#allocation1 + $0x18] sm:$0xff pattern:$0x73625140]
  %v369 = vld.sshfl [vmem:[#allocation1 + $0x20] sm:$0xff pattern:$0x73625140]
  %v371 = vld.sshfl [vmem:[#allocation1 + $0x28] sm:$0xff pattern:$0x73625140]
  %v373 = vld.sshfl [vmem:[#allocation1 + $0x30] sm:$0xff pattern:$0x73625140]
  %375 = vrot.lane.b32.xlu0 %v361, 127
  %v376 = vpop.permute.xlu0 %375
  %377 = vrot.lane.b32.xlu0 %v363, 127
  %v378 = vpop.permute.xlu0 %377
  %379 = vrot.lane.b32.xlu0 %v365, 127
  %v380 = vpop.permute.xlu0 %379
  %381 = vrot.lane.b32.xlu0 %v367, 127
  %v382 = vpop.permute.xlu0 %381
  %383 = vrot.lane.b32.xlu0 %v369, 127
  %v384 = vpop.permute.xlu0 %383
  %385 = vrot.lane.b32.xlu0 %v371, 127
  %v386 = vpop.permute.xlu0 %385
  %387 = vrot.lane.b32.xlu0 %v373, 127
  %v388 = vpop.permute.xlu0 %387
  %vm389 = vcmask 1039360
  %v390 = vsel %vm389, %v376, %v378
  %v391 = vsel %vm389, %v378, %v380
  %v392 = vsel %vm389, %v380, %v382
  %v393 = vsel %vm389, %v382, %v384
  %v394 = vsel %vm389, %v384, %v386
  %v395 = vsel %vm389, %v386, %v388
  %v397 = vsel %vm123, %v390, 0
  %v400 = vsel %vm123, %v391, 0
  %v403 = vsel %vm123, %v392, 0
  %v406 = vsel %vm123, %v393, 0
  %v409 = vsel %vm123, %v394, 0
  %v412 = vsel %vm123, %v395, 0
  %414 = vmatpush.bf16.msra.mxu0 0
  %415 = vmatpush.bf16.msra.mxu0 0
  %416 = vmatpush.bf16.msra.mxu0 0
  %417 = vmatpush.bf16.msra.mxu0 0
  %418 = vmatpush.bf16.msra.mxu0 0
  %419 = vmatpush.bf16.msra.mxu0 0
  %420 = vmatpush.bf16.msra.mxu0 0
  %421 = vmatpush.bf16.msra.mxu0 %v397
  %422 = vmatmul.bf16.gmra.mxu0 %v239
  %v423 = vpop.f32.mrf.mxu0
  %v424 = vadd.f32 0.0, %v423
  %v425 = vpop.f32.mrf.mxu0
  %v426 = vadd.f32 0.0, %v425
  %427 = vdwg.mxu0
  %428 = vmatpush.bf16.msra.mxu0 0
  %429 = vmatpush.bf16.msra.mxu0 0
  %430 = vmatpush.bf16.msra.mxu0 0
  %431 = vmatpush.bf16.msra.mxu0 0
  %432 = vmatpush.bf16.msra.mxu0 0
  %433 = vmatpush.bf16.msra.mxu0 0
  %434 = vmatpush.bf16.msra.mxu0 0
  %435 = vmatpush.bf16.msra.mxu0 %v400
  %436 = vmatmul.bf16.gmra.mxu0 %v239
  %v437 = vpop.f32.mrf.mxu0
  %v438 = vadd.f32 0.0, %v437
  %v439 = vpop.f32.mrf.mxu0
  %v440 = vadd.f32 0.0, %v439
  %441 = vdwg.mxu0
  %442 = vmatpush.bf16.msra.mxu0 0
  %443 = vmatpush.bf16.msra.mxu0 0
  %444 = vmatpush.bf16.msra.mxu0 0
  %445 = vmatpush.bf16.msra.mxu0 0
  %446 = vmatpush.bf16.msra.mxu0 0
  %447 = vmatpush.bf16.msra.mxu0 0
  %448 = vmatpush.bf16.msra.mxu0 0
  %449 = vmatpush.bf16.msra.mxu0 %v403
  %450 = vmatmul.bf16.gmra.mxu0 %v239
  %v451 = vpop.f32.mrf.mxu0
  %v452 = vadd.f32 0.0, %v451
  %v453 = vpop.f32.mrf.mxu0
  %v454 = vadd.f32 0.0, %v453
  %455 = vdwg.mxu0
  %456 = vmatpush.bf16.msra.mxu0 0
  %457 = vmatpush.bf16.msra.mxu0 0
  %458 = vmatpush.bf16.msra.mxu0 0
  %459 = vmatpush.bf16.msra.mxu0 0
  %460 = vmatpush.bf16.msra.mxu0 0
  %461 = vmatpush.bf16.msra.mxu0 0
  %462 = vmatpush.bf16.msra.mxu0 0
  %463 = vmatpush.bf16.msra.mxu0 %v406
  %464 = vmatmul.bf16.gmra.mxu0 %v239
  %v465 = vpop.f32.mrf.mxu0
  %v466 = vadd.f32 0.0, %v465
  %v467 = vpop.f32.mrf.mxu0
  %v468 = vadd.f32 0.0, %v467
  %469 = vdwg.mxu0
  %470 = vmatpush.bf16.msra.mxu0 0
  %471 = vmatpush.bf16.msra.mxu0 0
  %472 = vmatpush.bf16.msra.mxu0 0
  %473 = vmatpush.bf16.msra.mxu0 0
  %474 = vmatpush.bf16.msra.mxu0 0
  %475 = vmatpush.bf16.msra.mxu0 0
  %476 = vmatpush.bf16.msra.mxu0 0
  %477 = vmatpush.bf16.msra.mxu0 %v409
  %478 = vmatmul.bf16.gmra.mxu0 %v239
  %v479 = vpop.f32.mrf.mxu0
  %v480 = vadd.f32 0.0, %v479
  %v481 = vpop.f32.mrf.mxu0
  %v482 = vadd.f32 0.0, %v481
  %483 = vdwg.mxu0
  %484 = vmatpush.bf16.msra.mxu0 0
  %485 = vmatpush.bf16.msra.mxu0 0
  %486 = vmatpush.bf16.msra.mxu0 0
  %487 = vmatpush.bf16.msra.mxu0 0
  %488 = vmatpush.bf16.msra.mxu0 0
  %489 = vmatpush.bf16.msra.mxu0 0
  %490 = vmatpush.bf16.msra.mxu0 0
  %491 = vmatpush.bf16.msra.mxu0 %v412
  %492 = vmatmul.bf16.gmra.mxu0 %v239
  %v493 = vpop.f32.mrf.mxu0
  %v494 = vadd.f32 0.0, %v493
  %v495 = vpop.f32.mrf.mxu0
  %v496 = vadd.f32 0.0, %v495
  %497 = vdwg.mxu0
  %498 = vset.pattern.permute.xlu0 1
  %499 = vperm.xlu0 %498, %v76
  %v500 = vpop.permute.xlu0 %499
  %v502 = vadd.f32 %v424, %v500
  %v503 = vadd.f32 %v438, %v500
  %v504 = vadd.f32 %v452, %v500
  %v505 = vadd.f32 %v466, %v500
  %v506 = vadd.f32 %v480, %v500
  %v507 = vadd.f32 %v494, %v500
  %v508 = vmul.f32 %v152, %v502
  %v509 = vmul.f32 %v165, %v503
  %v510 = vmul.f32 %v178, %v504
  %v511 = vmul.f32 %v191, %v505
  %v512 = vmul.f32 %v204, %v506
  %v513 = vmul.f32 %v217, %v507
  %v514 = vmax.f32 %v348, %v508
  %v515 = vmax.f32 %v349, %v509
  %v516 = vmax.f32 %v350, %v510
  %v517 = vmax.f32 %v351, %v511
  %v518 = vmax.f32 %v352, %v512
  %v519 = vmax.f32 %v353, %v513
  %v520 = vsub.f32 %v348, %v514
  %v521 = vsub.f32 %v349, %v515
  %v522 = vsub.f32 %v350, %v516
  %v523 = vsub.f32 %v351, %v517
  %v524 = vsub.f32 %v352, %v518
  %v525 = vsub.f32 %v353, %v519
  %v526 = vmul.f32 %v520, 1.442695
  %v527 = vpow.pop %v526
  %v528 = vmul.f32 %v521, 1.442695
  %v529 = vpow.pop %v528
  %v530 = vmul.f32 %v522, 1.442695
  %v531 = vpow.pop %v530
  %v532 = vmul.f32 %v523, 1.442695
  %v533 = vpow.pop %v532
  %v534 = vmul.f32 %v524, 1.442695
  %v535 = vpow.pop %v534
  %v536 = vmul.f32 %v525, 1.442695
  %v537 = vpow.pop %v536
  %v538 = vsub.f32 %v508, %v514
  %v539 = vsub.f32 %v509, %v515
  %v540 = vsub.f32 %v510, %v516
  %v541 = vsub.f32 %v511, %v517
  %v542 = vsub.f32 %v512, %v518
  %v543 = vsub.f32 %v513, %v519
  %v544 = vmul.f32 %v538, 1.442695
  %v545 = vpow.pop %v544
  %v546 = vmul.f32 %v539, 1.442695
  %v547 = vpow.pop %v546
  %v548 = vmul.f32 %v540, 1.442695
  %v549 = vpow.pop %v548
  %v550 = vmul.f32 %v541, 1.442695
  %v551 = vpow.pop %v550
  %v552 = vmul.f32 %v542, 1.442695
  %v553 = vpow.pop %v552
  %v554 = vmul.f32 %v543, 1.442695
  %v555 = vpow.pop %v554
  %v556 = vadd.f32 %v527, %v545
  %v557 = vadd.f32 %v529, %v547
  %v558 = vadd.f32 %v531, %v549
  %v559 = vadd.f32 %v533, %v551
  %v560 = vadd.f32 %v535, %v553
  %v561 = vadd.f32 %v537, %v555
  %v562 = vmul.f32 %v265, %v527
  %v563 = vmul.f32 %v279, %v529
  %v564 = vmul.f32 %v293, %v531
  %v565 = vmul.f32 %v307, %v533
  %v566 = vmul.f32 %v321, %v535
  %v567 = vmul.f32 %v335, %v537
  %v568 = vmul.f32 %v545, %v426
  %v569 = vmul.f32 %v547, %v440
  %v570 = vmul.f32 %v549, %v454
  %v571 = vmul.f32 %v551, %v468
  %v572 = vmul.f32 %v553, %v482
  %v573 = vmul.f32 %v555, %v496
  %v574 = vadd.f32 %v562, %v568
  %v575 = vadd.f32 %v563, %v569
  %v576 = vadd.f32 %v564, %v570
  %v577 = vadd.f32 %v565, %v571
  %v578 = vadd.f32 %v566, %v572
  %v579 = vadd.f32 %v567, %v573
  %v580 = vld [vmem:[#allocation2] sm:$0xff]
  %v581 = vld [vmem:[#allocation2 + $0x8] sm:$0x3f]
  %583 = vst [vmem:[#allocation1] ss:$4 sm:$0xff] %v580
  %s585 = scalar_lea.vmem [#allocation1], 32
  %586 = vst [vmem:[%s585] ss:$4 sm:$0xff] %v581
  %v587 = vld.sshfl [vmem:[#allocation1] sm:$0xff pattern:$0x73625140]
  %v589 = vld.sshfl [vmem:[#allocation1 + $0x8] sm:$0xff pattern:$0x73625140]
  %v591 = vld.sshfl [vmem:[#allocation1 + $0x10] sm:$0xff pattern:$0x73625140]
  %v593 = vld.sshfl [vmem:[#allocation1 + $0x18] sm:$0xff pattern:$0x73625140]
  %v595 = vld.sshfl [vmem:[#allocation1 + $0x20] sm:$0xff pattern:$0x73625140]
  %v597 = vld.sshfl [vmem:[#allocation1 + $0x28] sm:$0xff pattern:$0x73625140]
  %v599 = vld.sshfl [vmem:[#allocation1 + $0x30] sm:$0xff pattern:$0x73625140]
  %601 = vrot.lane.b32.xlu0 %v587, 126
  %v602 = vpop.permute.xlu0 %601
  %603 = vrot.lane.b32.xlu0 %v589, 126
  %v604 = vpop.permute.xlu0 %603
  %605 = vrot.lane.b32.xlu0 %v591, 126
  %v606 = vpop.permute.xlu0 %605
  %607 = vrot.lane.b32.xlu0 %v593, 126
  %v608 = vpop.permute.xlu0 %607
  %609 = vrot.lane.b32.xlu0 %v595, 126
  %v610 = vpop.permute.xlu0 %609
  %611 = vrot.lane.b32.xlu0 %v597, 126
  %v612 = vpop.permute.xlu0 %611
  %613 = vrot.lane.b32.xlu0 %v599, 126
  %v614 = vpop.permute.xlu0 %613
  %vm615 = vcmask 1031168
  %v616 = vsel %vm615, %v602, %v604
  %v617 = vsel %vm615, %v604, %v606
  %v618 = vsel %vm615, %v606, %v608
  %v619 = vsel %vm615, %v608, %v610
  %v620 = vsel %vm615, %v610, %v612
  %v621 = vsel %vm615, %v612, %v614
  %v623 = vsel %vm123, %v616, 0
  %v626 = vsel %vm123, %v617, 0
  %v629 = vsel %vm123, %v618, 0
  %v632 = vsel %vm123, %v619, 0
  %v635 = vsel %vm123, %v620, 0
  %v638 = vsel %vm123, %v621, 0
  %640 = vmatpush.bf16.msra.mxu0 0
  %641 = vmatpush.bf16.msra.mxu0 0
  %642 = vmatpush.bf16.msra.mxu0 0
  %643 = vmatpush.bf16.msra.mxu0 0
  %644 = vmatpush.bf16.msra.mxu0 0
  %645 = vmatpush.bf16.msra.mxu0 0
  %646 = vmatpush.bf16.msra.mxu0 0
  %647 = vmatpush.bf16.msra.mxu0 %v623
  %648 = vmatmul.bf16.gmra.mxu0 %v239
  %v649 = vpop.f32.mrf.mxu0
  %v650 = vadd.f32 0.0, %v649
  %v651 = vpop.f32.mrf.mxu0
  %v652 = vadd.f32 0.0, %v651
  %653 = vdwg.mxu0
  %654 = vmatpush.bf16.msra.mxu0 0
  %655 = vmatpush.bf16.msra.mxu0 0
  %656 = vmatpush.bf16.msra.mxu0 0
  %657 = vmatpush.bf16.msra.mxu0 0
  %658 = vmatpush.bf16.msra.mxu0 0
  %659 = vmatpush.bf16.msra.mxu0 0
  %660 = vmatpush.bf16.msra.mxu0 0
  %661 = vmatpush.bf16.msra.mxu0 %v626
  %662 = vmatmul.bf16.gmra.mxu0 %v239
  %v663 = vpop.f32.mrf.mxu0
  %v664 = vadd.f32 0.0, %v663
  %v665 = vpop.f32.mrf.mxu0
  %v666 = vadd.f32 0.0, %v665
  %667 = vdwg.mxu0
  %668 = vmatpush.bf16.msra.mxu0 0
  %669 = vmatpush.bf16.msra.mxu0 0
  %670 = vmatpush.bf16.msra.mxu0 0
  %671 = vmatpush.bf16.msra.mxu0 0
  %672 = vmatpush.bf16.msra.mxu0 0
  %673 = vmatpush.bf16.msra.mxu0 0
  %674 = vmatpush.bf16.msra.mxu0 0
  %675 = vmatpush.bf16.msra.mxu0 %v629
  %676 = vmatmul.bf16.gmra.mxu0 %v239
  %v677 = vpop.f32.mrf.mxu0
  %v678 = vadd.f32 0.0, %v677
  %v679 = vpop.f32.mrf.mxu0
  %v680 = vadd.f32 0.0, %v679
  %681 = vdwg.mxu0
  %682 = vmatpush.bf16.msra.mxu0 0
  %683 = vmatpush.bf16.msra.mxu0 0
  %684 = vmatpush.bf16.msra.mxu0 0
  %685 = vmatpush.bf16.msra.mxu0 0
  %686 = vmatpush.bf16.msra.mxu0 0
  %687 = vmatpush.bf16.msra.mxu0 0
  %688 = vmatpush.bf16.msra.mxu0 0
  %689 = vmatpush.bf16.msra.mxu0 %v632
  %690 = vmatmul.bf16.gmra.mxu0 %v239
  %v691 = vpop.f32.mrf.mxu0
  %v692 = vadd.f32 0.0, %v691
  %v693 = vpop.f32.mrf.mxu0
  %v694 = vadd.f32 0.0, %v693
  %695 = vdwg.mxu0
  %696 = vmatpush.bf16.msra.mxu0 0
  %697 = vmatpush.bf16.msra.mxu0 0
  %698 = vmatpush.bf16.msra.mxu0 0
  %699 = vmatpush.bf16.msra.mxu0 0
  %700 = vmatpush.bf16.msra.mxu0 0
  %701 = vmatpush.bf16.msra.mxu0 0
  %702 = vmatpush.bf16.msra.mxu0 0
  %703 = vmatpush.bf16.msra.mxu0 %v635
  %704 = vmatmul.bf16.gmra.mxu0 %v239
  %v705 = vpop.f32.mrf.mxu0
  %v706 = vadd.f32 0.0, %v705
  %v707 = vpop.f32.mrf.mxu0
  %v708 = vadd.f32 0.0, %v707
  %709 = vdwg.mxu0
  %710 = vmatpush.bf16.msra.mxu0 0
  %711 = vmatpush.bf16.msra.mxu0 0
  %712 = vmatpush.bf16.msra.mxu0 0
  %713 = vmatpush.bf16.msra.mxu0 0
  %714 = vmatpush.bf16.msra.mxu0 0
  %715 = vmatpush.bf16.msra.mxu0 0
  %716 = vmatpush.bf16.msra.mxu0 0
  %717 = vmatpush.bf16.msra.mxu0 %v638
  %718 = vmatmul.bf16.gmra.mxu0 %v239
  %v719 = vpop.f32.mrf.mxu0
  %v720 = vadd.f32 0.0, %v719
  %v721 = vpop.f32.mrf.mxu0
  %v722 = vadd.f32 0.0, %v721
  %723 = vdwg.mxu0
  %724 = vset.pattern.permute.xlu0 2
  %725 = vperm.xlu0 %724, %v76
  %v726 = vpop.permute.xlu0 %725
  %v728 = vadd.f32 %v650, %v726
  %v729 = vadd.f32 %v664, %v726
  %v730 = vadd.f32 %v678, %v726
  %v731 = vadd.f32 %v692, %v726
  %v732 = vadd.f32 %v706, %v726
  %v733 = vadd.f32 %v720, %v726
  %v734 = vmul.f32 %v152, %v728
  %v735 = vmul.f32 %v165, %v729
  %v736 = vmul.f32 %v178, %v730
  %v737 = vmul.f32 %v191, %v731
  %v738 = vmul.f32 %v204, %v732
  %v739 = vmul.f32 %v217, %v733
  %v740 = vmax.f32 %v514, %v734
  %v741 = vmax.f32 %v515, %v735
  %v742 = vmax.f32 %v516, %v736
  %v743 = vmax.f32 %v517, %v737
  %v744 = vmax.f32 %v518, %v738
  %v745 = vmax.f32 %v519, %v739
  %v746 = vsub.f32 %v514, %v740
  %v747 = vsub.f32 %v515, %v741
  %v748 = vsub.f32 %v516, %v742
  %v749 = vsub.f32 %v517, %v743
  %v750 = vsub.f32 %v518, %v744
  %v751 = vsub.f32 %v519, %v745
  %v752 = vmul.f32 %v746, 1.442695
  %v753 = vpow.pop %v752
  %v754 = vmul.f32 %v747, 1.442695
  %v755 = vpow.pop %v754
  %v756 = vmul.f32 %v748, 1.442695
  %v757 = vpow.pop %v756
  %v758 = vmul.f32 %v749, 1.442695
  %v759 = vpow.pop %v758
  %v760 = vmul.f32 %v750, 1.442695
  %v761 = vpow.pop %v760
  %v762 = vmul.f32 %v751, 1.442695
  %v763 = vpow.pop %v762
  %v764 = vsub.f32 %v734, %v740
  %v765 = vsub.f32 %v735, %v741
  %v766 = vsub.f32 %v736, %v742
  %v767 = vsub.f32 %v737, %v743
  %v768 = vsub.f32 %v738, %v744
  %v769 = vsub.f32 %v739, %v745
  %v770 = vmul.f32 %v764, 1.442695
  %v771 = vpow.pop %v770
  %v772 = vmul.f32 %v765, 1.442695
  %v773 = vpow.pop %v772
  %v774 = vmul.f32 %v766, 1.442695
  %v775 = vpow.pop %v774
  %v776 = vmul.f32 %v767, 1.442695
  %v777 = vpow.pop %v776
  %v778 = vmul.f32 %v768, 1.442695
  %v779 = vpow.pop %v778
  %v780 = vmul.f32 %v769, 1.442695
  %v781 = vpow.pop %v780
  %v782 = vmul.f32 %v556, %v753
  %v783 = vmul.f32 %v557, %v755
  %v784 = vmul.f32 %v558, %v757
  %v785 = vmul.f32 %v559, %v759
  %v786 = vmul.f32 %v560, %v761
  %v787 = vmul.f32 %v561, %v763
  %v788 = vadd.f32 %v782, %v771
  %v789 = vadd.f32 %v783, %v773
  %v790 = vadd.f32 %v784, %v775
  %v791 = vadd.f32 %v785, %v777
  %v792 = vadd.f32 %v786, %v779
  %v793 = vadd.f32 %v787, %v781
  %v794 = vmul.f32 %v574, %v753
  %v795 = vmul.f32 %v575, %v755
  %v796 = vmul.f32 %v576, %v757
  %v797 = vmul.f32 %v577, %v759
  %v798 = vmul.f32 %v578, %v761
  %v799 = vmul.f32 %v579, %v763
  %v800 = vmul.f32 %v771, %v652
  %v801 = vmul.f32 %v773, %v666
  %v802 = vmul.f32 %v775, %v680
  %v803 = vmul.f32 %v777, %v694
  %v804 = vmul.f32 %v779, %v708
  %v805 = vmul.f32 %v781, %v722
  %v806 = vadd.f32 %v794, %v800
  %v807 = vadd.f32 %v795, %v801
  %v808 = vadd.f32 %v796, %v802
  %v809 = vadd.f32 %v797, %v803
  %v810 = vadd.f32 %v798, %v804
  %v811 = vadd.f32 %v799, %v805
  %v812 = vld [vmem:[#allocation2] sm:$0xff]
  %v813 = vld [vmem:[#allocation2 + $0x8] sm:$0x3f]
  %815 = vst [vmem:[#allocation1] ss:$4 sm:$0xff] %v812
  %s817 = scalar_lea.vmem [#allocation1], 32
  %818 = vst [vmem:[%s817] ss:$4 sm:$0xff] %v813
  %v819 = vld.sshfl [vmem:[#allocation1] sm:$0xff pattern:$0x73625140]
  %v821 = vld.sshfl [vmem:[#allocation1 + $0x8] sm:$0xff pattern:$0x73625140]
  %v823 = vld.sshfl [vmem:[#allocation1 + $0x10] sm:$0xff pattern:$0x73625140]
  %v825 = vld.sshfl [vmem:[#allocation1 + $0x18] sm:$0xff pattern:$0x73625140]
  %v827 = vld.sshfl [vmem:[#allocation1 + $0x20] sm:$0xff pattern:$0x73625140]
  %v829 = vld.sshfl [vmem:[#allocation1 + $0x28] sm:$0xff pattern:$0x73625140]
  %v831 = vld.sshfl [vmem:[#allocation1 + $0x30] sm:$0xff pattern:$0x73625140]
  %833 = vrot.lane.b32.xlu0 %v819, 110
  %v834 = vpop.permute.xlu0 %833
  %835 = vrot.lane.b32.xlu0 %v821, 110
  %v836 = vpop.permute.xlu0 %835
  %837 = vrot.lane.b32.xlu0 %v823, 110
  %v838 = vpop.permute.xlu0 %837
  %839 = vrot.lane.b32.xlu0 %v825, 110
  %v840 = vpop.permute.xlu0 %839
  %841 = vrot.lane.b32.xlu0 %v827, 110
  %v842 = vpop.permute.xlu0 %841
  %843 = vrot.lane.b32.xlu0 %v829, 110
  %v844 = vpop.permute.xlu0 %843
  %845 = vrot.lane.b32.xlu0 %v831, 110
  %v846 = vpop.permute.xlu0 %845
  %vm847 = vcmask 900096
  %v848 = vsel %vm847, %v834, %v836
  %v849 = vsel %vm847, %v836, %v838
  %v850 = vsel %vm847, %v838, %v840
  %v851 = vsel %vm847, %v840, %v842
  %v852 = vsel %vm847, %v842, %v844
  %v853 = vsel %vm847, %v844, %v846
  %v855 = vsel %vm123, %v848, 0
  %v858 = vsel %vm123, %v849, 0
  %v861 = vsel %vm123, %v850, 0
  %v864 = vsel %vm123, %v851, 0
  %v867 = vsel %vm123, %v852, 0
  %v870 = vsel %vm123, %v853, 0
  %872 = vmatpush.bf16.msra.mxu0 0
  %873 = vmatpush.bf16.msra.mxu0 0
  %874 = vmatpush.bf16.msra.mxu0 0
  %875 = vmatpush.bf16.msra.mxu0 0
  %876 = vmatpush.bf16.msra.mxu0 0
  %877 = vmatpush.bf16.msra.mxu0 0
  %878 = vmatpush.bf16.msra.mxu0 0
  %879 = vmatpush.bf16.msra.mxu0 %v855
  %880 = vmatmul.bf16.gmra.mxu0 %v239
  %v881 = vpop.f32.mrf.mxu0
  %v882 = vadd.f32 0.0, %v881
  %v883 = vpop.f32.mrf.mxu0
  %v884 = vadd.f32 0.0, %v883
  %885 = vdwg.mxu0
  %886 = vmatpush.bf16.msra.mxu0 0
  %887 = vmatpush.bf16.msra.mxu0 0
  %888 = vmatpush.bf16.msra.mxu0 0
  %889 = vmatpush.bf16.msra.mxu0 0
  %890 = vmatpush.bf16.msra.mxu0 0
  %891 = vmatpush.bf16.msra.mxu0 0
  %892 = vmatpush.bf16.msra.mxu0 0
  %893 = vmatpush.bf16.msra.mxu0 %v858
  %894 = vmatmul.bf16.gmra.mxu0 %v239
  %v895 = vpop.f32.mrf.mxu0
  %v896 = vadd.f32 0.0, %v895
  %v897 = vpop.f32.mrf.mxu0
  %v898 = vadd.f32 0.0, %v897
  %899 = vdwg.mxu0
  %900 = vmatpush.bf16.msra.mxu0 0
  %901 = vmatpush.bf16.msra.mxu0 0
  %902 = vmatpush.bf16.msra.mxu0 0
  %903 = vmatpush.bf16.msra.mxu0 0
  %904 = vmatpush.bf16.msra.mxu0 0
  %905 = vmatpush.bf16.msra.mxu0 0
  %906 = vmatpush.bf16.msra.mxu0 0
  %907 = vmatpush.bf16.msra.mxu0 %v861
  %908 = vmatmul.bf16.gmra.mxu0 %v239
  %v909 = vpop.f32.mrf.mxu0
  %v910 = vadd.f32 0.0, %v909
  %v911 = vpop.f32.mrf.mxu0
  %v912 = vadd.f32 0.0, %v911
  %913 = vdwg.mxu0
  %914 = vmatpush.bf16.msra.mxu0 0
  %915 = vmatpush.bf16.msra.mxu0 0
  %916 = vmatpush.bf16.msra.mxu0 0
  %917 = vmatpush.bf16.msra.mxu0 0
  %918 = vmatpush.bf16.msra.mxu0 0
  %919 = vmatpush.bf16.msra.mxu0 0
  %920 = vmatpush.bf16.msra.mxu0 0
  %921 = vmatpush.bf16.msra.mxu0 %v864
  %922 = vmatmul.bf16.gmra.mxu0 %v239
  %v923 = vpop.f32.mrf.mxu0
  %v924 = vadd.f32 0.0, %v923
  %v925 = vpop.f32.mrf.mxu0
  %v926 = vadd.f32 0.0, %v925
  %927 = vdwg.mxu0
  %928 = vmatpush.bf16.msra.mxu0 0
  %929 = vmatpush.bf16.msra.mxu0 0
  %930 = vmatpush.bf16.msra.mxu0 0
  %931 = vmatpush.bf16.msra.mxu0 0
  %932 = vmatpush.bf16.msra.mxu0 0
  %933 = vmatpush.bf16.msra.mxu0 0
  %934 = vmatpush.bf16.msra.mxu0 0
  %935 = vmatpush.bf16.msra.mxu0 %v867
  %936 = vmatmul.bf16.gmra.mxu0 %v239
  %v937 = vpop.f32.mrf.mxu0
  %v938 = vadd.f32 0.0, %v937
  %v939 = vpop.f32.mrf.mxu0
  %v940 = vadd.f32 0.0, %v939
  %941 = vdwg.mxu0
  %942 = vmatpush.bf16.msra.mxu0 0
  %943 = vmatpush.bf16.msra.mxu0 0
  %944 = vmatpush.bf16.msra.mxu0 0
  %945 = vmatpush.bf16.msra.mxu0 0
  %946 = vmatpush.bf16.msra.mxu0 0
  %947 = vmatpush.bf16.msra.mxu0 0
  %948 = vmatpush.bf16.msra.mxu0 0
  %949 = vmatpush.bf16.msra.mxu0 %v870
  %950 = vmatmul.bf16.gmra.mxu0 %v239
  %v951 = vpop.f32.mrf.mxu0
  %v952 = vadd.f32 0.0, %v951
  %v953 = vpop.f32.mrf.mxu0
  %v954 = vadd.f32 0.0, %v953
  %955 = vdwg.mxu0
  %956 = vset.pattern.permute.xlu0 3
  %957 = vperm.xlu0 %956, %v76
  %v958 = vpop.permute.xlu0 %957
  %v960 = vadd.f32 %v882, %v958
  %v961 = vadd.f32 %v896, %v958
  %v962 = vadd.f32 %v910, %v958
  %v963 = vadd.f32 %v924, %v958
  %v964 = vadd.f32 %v938, %v958
  %v965 = vadd.f32 %v952, %v958
  %v966 = vmul.f32 %v152, %v960
  %v967 = vmul.f32 %v165, %v961
  %v968 = vmul.f32 %v178, %v962
  %v969 = vmul.f32 %v191, %v963
  %v970 = vmul.f32 %v204, %v964
  %v971 = vmul.f32 %v217, %v965
  %v972 = vmax.f32 %v740, %v966
  %v973 = vmax.f32 %v741, %v967
  %v974 = vmax.f32 %v742, %v968
  %v975 = vmax.f32 %v743, %v969
  %v976 = vmax.f32 %v744, %v970
  %v977 = vmax.f32 %v745, %v971
  %v978 = vsub.f32 %v740, %v972
  %v979 = vsub.f32 %v741, %v973
  %v980 = vsub.f32 %v742, %v974
  %v981 = vsub.f32 %v743, %v975
  %v982 = vsub.f32 %v744, %v976
  %v983 = vsub.f32 %v745, %v977
  %v984 = vmul.f32 %v978, 1.442695
  %v985 = vpow.pop %v984
  %v986 = vmul.f32 %v979, 1.442695
  %v987 = vpow.pop %v986
  %v988 = vmul.f32 %v980, 1.442695
  %v989 = vpow.pop %v988
  %v990 = vmul.f32 %v981, 1.442695
  %v991 = vpow.pop %v990
  %v992 = vmul.f32 %v982, 1.442695
  %v993 = vpow.pop %v992
  %v994 = vmul.f32 %v983, 1.442695
  %v995 = vpow.pop %v994
  %v996 = vsub.f32 %v966, %v972
  %v997 = vsub.f32 %v967, %v973
  %v998 = vsub.f32 %v968, %v974
  %v999 = vsub.f32 %v969, %v975
  %v1000 = vsub.f32 %v970, %v976
  %v1001 = vsub.f32 %v971, %v977
  %v1002 = vmul.f32 %v996, 1.442695
  %v1003 = vpow.pop %v1002
  %v1004 = vmul.f32 %v997, 1.442695
  %v1005 = vpow.pop %v1004
  %v1006 = vmul.f32 %v998, 1.442695
  %v1007 = vpow.pop %v1006
  %v1008 = vmul.f32 %v999, 1.442695
  %v1009 = vpow.pop %v1008
  %v1010 = vmul.f32 %v1000, 1.442695
  %v1011 = vpow.pop %v1010
  %v1012 = vmul.f32 %v1001, 1.442695
  %v1013 = vpow.pop %v1012
  %v1014 = vmul.f32 %v788, %v985
  %v1015 = vmul.f32 %v789, %v987
  %v1016 = vmul.f32 %v790, %v989
  %v1017 = vmul.f32 %v791, %v991
  %v1018 = vmul.f32 %v792, %v993
  %v1019 = vmul.f32 %v793, %v995
  %v1020 = vadd.f32 %v1014, %v1003
  %v1021 = vadd.f32 %v1015, %v1005
  %v1022 = vadd.f32 %v1016, %v1007
  %v1023 = vadd.f32 %v1017, %v1009
  %v1024 = vadd.f32 %v1018, %v1011
  %v1025 = vadd.f32 %v1019, %v1013
  %v1026 = vmul.f32 %v806, %v985
  %v1027 = vmul.f32 %v807, %v987
  %v1028 = vmul.f32 %v808, %v989
  %v1029 = vmul.f32 %v809, %v991
  %v1030 = vmul.f32 %v810, %v993
  %v1031 = vmul.f32 %v811, %v995
  %v1032 = vmul.f32 %v1003, %v884
  %v1033 = vmul.f32 %v1005, %v898
  %v1034 = vmul.f32 %v1007, %v912
  %v1035 = vmul.f32 %v1009, %v926
  %v1036 = vmul.f32 %v1011, %v940
  %v1037 = vmul.f32 %v1013, %v954
  %v1038 = vadd.f32 %v1026, %v1032
  %v1039 = vadd.f32 %v1027, %v1033
  %v1040 = vadd.f32 %v1028, %v1034
  %v1041 = vadd.f32 %v1029, %v1035
  %v1042 = vadd.f32 %v1030, %v1036
  %v1043 = vadd.f32 %v1031, %v1037
  %1044 = vst [vmem:[#allocation1] ss:$4 sm:$0xff] %v77
  %s1045 = scalar_lea.vmem [#allocation1], 32
  %1046 = vst [vmem:[%s1045] ss:$4 sm:$0xff] %v78
  %v1047 = vld.sshfl [vmem:[#allocation1] sm:$0xff pattern:$0x73625140]
  %v1049 = vld.sshfl [vmem:[#allocation1 + $0x8] sm:$0xff pattern:$0x73625140]
  %v1051 = vld.sshfl [vmem:[#allocation1 + $0x10] sm:$0xff pattern:$0x73625140]
  %v1053 = vld.sshfl [vmem:[#allocation1 + $0x18] sm:$0xff pattern:$0x73625140]
  %v1055 = vld.sshfl [vmem:[#allocation1 + $0x20] sm:$0xff pattern:$0x73625140]
  %v1057 = vld.sshfl [vmem:[#allocation1 + $0x28] sm:$0xff pattern:$0x73625140]
  %v1059 = vld.sshfl [vmem:[#allocation1 + $0x30] sm:$0xff pattern:$0x73625140]
  %1061 = vrot.lane.b32.xlu0 %v1047, 109
  %v1062 = vpop.permute.xlu0 %1061
  %1063 = vrot.lane.b32.xlu0 %v1049, 109
  %v1064 = vpop.permute.xlu0 %1063
  %1065 = vrot.lane.b32.xlu0 %v1051, 109
  %v1066 = vpop.permute.xlu0 %1065
  %1067 = vrot.lane.b32.xlu0 %v1053, 109
  %v1068 = vpop.permute.xlu0 %1067
  %1069 = vrot.lane.b32.xlu0 %v1055, 109
  %v1070 = vpop.permute.xlu0 %1069
  %1071 = vrot.lane.b32.xlu0 %v1057, 109
  %v1072 = vpop.permute.xlu0 %1071
  %1073 = vrot.lane.b32.xlu0 %v1059, 109
  %v1074 = vpop.permute.xlu0 %1073
  %v1075 = vsel %vm112, %v1062, %v1064
  %v1076 = vsel %vm112, %v1064, %v1066
  %v1077 = vsel %vm112, %v1066, %v1068
  %v1078 = vsel %vm112, %v1068, %v1070
  %v1079 = vsel %vm112, %v1070, %v1072
  %v1080 = vsel %vm112, %v1072, %v1074
  %v1082 = vsel %vm123, %v1075, 0
  %v1085 = vsel %vm123, %v1076, 0
  %v1088 = vsel %vm123, %v1077, 0
  %v1091 = vsel %vm123, %v1078, 0
  %v1094 = vsel %vm123, %v1079, 0
  %v1097 = vsel %vm123, %v1080, 0
  %1099 = vmatpush.bf16.msra.mxu0 0
  %1100 = vmatpush.bf16.msra.mxu0 0
  %1101 = vmatpush.bf16.msra.mxu0 0
  %1102 = vmatpush.bf16.msra.mxu0 0
  %1103 = vmatpush.bf16.msra.mxu0 0
  %1104 = vmatpush.bf16.msra.mxu0 0
  %1105 = vmatpush.bf16.msra.mxu0 0
  %1106 = vmatpush.bf16.msra.mxu0 %v1082
  %1107 = vmatmul.bf16.gmra.mxu0 %v239
  %v1108 = vpop.f32.mrf.mxu0
  %v1109 = vadd.f32 0.0, %v1108
  %v1110 = vpop.f32.mrf.mxu0
  %v1111 = vadd.f32 0.0, %v1110
  %1112 = vdwg.mxu0
  %1113 = vmatpush.bf16.msra.mxu0 0
  %1114 = vmatpush.bf16.msra.mxu0 0
  %1115 = vmatpush.bf16.msra.mxu0 0
  %1116 = vmatpush.bf16.msra.mxu0 0
  %1117 = vmatpush.bf16.msra.mxu0 0
  %1118 = vmatpush.bf16.msra.mxu0 0
  %1119 = vmatpush.bf16.msra.mxu0 0
  %1120 = vmatpush.bf16.msra.mxu0 %v1085
  %1121 = vmatmul.bf16.gmra.mxu0 %v239
  %v1122 = vpop.f32.mrf.mxu0
  %v1123 = vadd.f32 0.0, %v1122
  %v1124 = vpop.f32.mrf.mxu0
  %v1125 = vadd.f32 0.0, %v1124
  %1126 = vdwg.mxu0
  %1127 = vmatpush.bf16.msra.mxu0 0
  %1128 = vmatpush.bf16.msra.mxu0 0
  %1129 = vmatpush.bf16.msra.mxu0 0
  %1130 = vmatpush.bf16.msra.mxu0 0
  %1131 = vmatpush.bf16.msra.mxu0 0
  %1132 = vmatpush.bf16.msra.mxu0 0
  %1133 = vmatpush.bf16.msra.mxu0 0
  %1134 = vmatpush.bf16.msra.mxu0 %v1088
  %1135 = vmatmul.bf16.gmra.mxu0 %v239
  %v1136 = vpop.f32.mrf.mxu0
  %v1137 = vadd.f32 0.0, %v1136
  %v1138 = vpop.f32.mrf.mxu0
  %v1139 = vadd.f32 0.0, %v1138
  %1140 = vdwg.mxu0
  %1141 = vmatpush.bf16.msra.mxu0 0
  %1142 = vmatpush.bf16.msra.mxu0 0
  %1143 = vmatpush.bf16.msra.mxu0 0
  %1144 = vmatpush.bf16.msra.mxu0 0
  %1145 = vmatpush.bf16.msra.mxu0 0
  %1146 = vmatpush.bf16.msra.mxu0 0
  %1147 = vmatpush.bf16.msra.mxu0 0
  %1148 = vmatpush.bf16.msra.mxu0 %v1091
  %1149 = vmatmul.bf16.gmra.mxu0 %v239
  %v1150 = vpop.f32.mrf.mxu0
  %v1151 = vadd.f32 0.0, %v1150
  %v1152 = vpop.f32.mrf.mxu0
  %v1153 = vadd.f32 0.0, %v1152
  %1154 = vdwg.mxu0
  %1155 = vmatpush.bf16.msra.mxu0 0
  %1156 = vmatpush.bf16.msra.mxu0 0
  %1157 = vmatpush.bf16.msra.mxu0 0
  %1158 = vmatpush.bf16.msra.mxu0 0
  %1159 = vmatpush.bf16.msra.mxu0 0
  %1160 = vmatpush.bf16.msra.mxu0 0
  %1161 = vmatpush.bf16.msra.mxu0 0
  %1162 = vmatpush.bf16.msra.mxu0 %v1094
  %1163 = vmatmul.bf16.gmra.mxu0 %v239
  %v1164 = vpop.f32.mrf.mxu0
  %v1165 = vadd.f32 0.0, %v1164
  %v1166 = vpop.f32.mrf.mxu0
  %v1167 = vadd.f32 0.0, %v1166
  %1168 = vdwg.mxu0
  %1169 = vmatpush.bf16.msra.mxu0 0
  %1170 = vmatpush.bf16.msra.mxu0 0
  %1171 = vmatpush.bf16.msra.mxu0 0
  %1172 = vmatpush.bf16.msra.mxu0 0
  %1173 = vmatpush.bf16.msra.mxu0 0
  %1174 = vmatpush.bf16.msra.mxu0 0
  %1175 = vmatpush.bf16.msra.mxu0 0
  %1176 = vmatpush.bf16.msra.mxu0 %v1097
  %1177 = vmatmul.bf16.gmra.mxu0 %v239
  %v1178 = vpop.f32.mrf.mxu0
  %v1179 = vadd.f32 0.0, %v1178
  %v1180 = vpop.f32.mrf.mxu0
  %v1181 = vadd.f32 0.0, %v1180
  %1182 = vdwg.mxu0
  %1183 = vset.pattern.permute.xlu0 4
  %1184 = vperm.xlu0 %1183, %v76
  %v1185 = vpop.permute.xlu0 %1184
  %v1187 = vadd.f32 %v1109, %v1185
  %v1188 = vadd.f32 %v1123, %v1185
  %v1189 = vadd.f32 %v1137, %v1185
  %v1190 = vadd.f32 %v1151, %v1185
  %v1191 = vadd.f32 %v1165, %v1185
  %v1192 = vadd.f32 %v1179, %v1185
  %v1193 = vmul.f32 %v152, %v1187
  %v1194 = vmul.f32 %v165, %v1188
  %v1195 = vmul.f32 %v178, %v1189
  %v1196 = vmul.f32 %v191, %v1190
  %v1197 = vmul.f32 %v204, %v1191
  %v1198 = vmul.f32 %v217, %v1192
  %v1199 = vmax.f32 %v972, %v1193
  %v1200 = vmax.f32 %v973, %v1194
  %v1201 = vmax.f32 %v974, %v1195
  %v1202 = vmax.f32 %v975, %v1196
  %v1203 = vmax.f32 %v976, %v1197
  %v1204 = vmax.f32 %v977, %v1198
  %v1205 = vsub.f32 %v972, %v1199
  %v1206 = vsub.f32 %v973, %v1200
  %v1207 = vsub.f32 %v974, %v1201
  %v1208 = vsub.f32 %v975, %v1202
  %v1209 = vsub.f32 %v976, %v1203
  %v1210 = vsub.f32 %v977, %v1204
  %v1211 = vmul.f32 %v1205, 1.442695
  %v1212 = vpow.pop %v1211
  %v1213 = vmul.f32 %v1206, 1.442695
  %v1214 = vpow.pop %v1213
  %v1215 = vmul.f32 %v1207, 1.442695
  %v1216 = vpow.pop %v1215
  %v1217 = vmul.f32 %v1208, 1.442695
  %v1218 = vpow.pop %v1217
  %v1219 = vmul.f32 %v1209, 1.442695
  %v1220 = vpow.pop %v1219
  %v1221 = vmul.f32 %v1210, 1.442695
  %v1222 = vpow.pop %v1221
  %v1223 = vsub.f32 %v1193, %v1199
  %v1224 = vsub.f32 %v1194, %v1200
  %v1225 = vsub.f32 %v1195, %v1201
  %v1226 = vsub.f32 %v1196, %v1202
  %v1227 = vsub.f32 %v1197, %v1203
  %v1228 = vsub.f32 %v1198, %v1204
  %v1229 = vmul.f32 %v1223, 1.442695
  %v1230 = vpow.pop %v1229
  %v1231 = vmul.f32 %v1224, 1.442695
  %v1232 = vpow.pop %v1231
  %v1233 = vmul.f32 %v1225, 1.442695
  %v1234 = vpow.pop %v1233
  %v1235 = vmul.f32 %v1226, 1.442695
  %v1236 = vpow.pop %v1235
  %v1237 = vmul.f32 %v1227, 1.442695
  %v1238 = vpow.pop %v1237
  %v1239 = vmul.f32 %v1228, 1.442695
  %v1240 = vpow.pop %v1239
  %v1241 = vmul.f32 %v1020, %v1212
  %v1242 = vmul.f32 %v1021, %v1214
  %v1243 = vmul.f32 %v1022, %v1216
  %v1244 = vmul.f32 %v1023, %v1218
  %v1245 = vmul.f32 %v1024, %v1220
  %v1246 = vmul.f32 %v1025, %v1222
  %v1247 = vadd.f32 %v1241, %v1230
  %v1248 = vadd.f32 %v1242, %v1232
  %v1249 = vadd.f32 %v1243, %v1234
  %v1250 = vadd.f32 %v1244, %v1236
  %v1251 = vadd.f32 %v1245, %v1238
  %v1252 = vadd.f32 %v1246, %v1240
  %v1253 = vmul.f32 %v1038, %v1212
  %v1254 = vmul.f32 %v1039, %v1214
  %v1255 = vmul.f32 %v1040, %v1216
  %v1256 = vmul.f32 %v1041, %v1218
  %v1257 = vmul.f32 %v1042, %v1220
  %v1258 = vmul.f32 %v1043, %v1222
  %v1259 = vmul.f32 %v1230, %v1111
  %v1260 = vmul.f32 %v1232, %v1125
  %v1261 = vmul.f32 %v1234, %v1139
  %v1262 = vmul.f32 %v1236, %v1153
  %v1263 = vmul.f32 %v1238, %v1167
  %v1264 = vmul.f32 %v1240, %v1181
  %v1265 = vadd.f32 %v1253, %v1259
  %v1266 = vadd.f32 %v1254, %v1260
  %v1267 = vadd.f32 %v1255, %v1261
  %v1268 = vadd.f32 %v1256, %v1262
  %v1269 = vadd.f32 %v1257, %v1263
  %v1270 = vadd.f32 %v1258, %v1264
  %v1271 = vld [vmem:[#allocation2] sm:$0xff]
  %v1272 = vld [vmem:[#allocation2 + $0x8] sm:$0x3f]
  %1274 = vst [vmem:[#allocation1] ss:$4 sm:$0xff] %v1271
  %s1276 = scalar_lea.vmem [#allocation1], 32
  %1277 = vst [vmem:[%s1276] ss:$4 sm:$0xff] %v1272
  %v1278 = vld.sshfl [vmem:[#allocation1] sm:$0xff pattern:$0x73625140]
  %v1280 = vld.sshfl [vmem:[#allocation1 + $0x8] sm:$0xff pattern:$0x73625140]
  %v1282 = vld.sshfl [vmem:[#allocation1 + $0x10] sm:$0xff pattern:$0x73625140]
  %v1284 = vld.sshfl [vmem:[#allocation1 + $0x18] sm:$0xff pattern:$0x73625140]
  %v1286 = vld.sshfl [vmem:[#allocation1 + $0x20] sm:$0xff pattern:$0x73625140]
  %v1288 = vld.sshfl [vmem:[#allocation1 + $0x28] sm:$0xff pattern:$0x73625140]
  %v1290 = vld.sshfl [vmem:[#allocation1 + $0x30] sm:$0xff pattern:$0x73625140]
  %1292 = vrot.lane.b32.xlu0 %v1278, 108
  %v1293 = vpop.permute.xlu0 %1292
  %1294 = vrot.lane.b32.xlu0 %v1280, 108
  %v1295 = vpop.permute.xlu0 %1294
  %1296 = vrot.lane.b32.xlu0 %v1282, 108
  %v1297 = vpop.permute.xlu0 %1296
  %1298 = vrot.lane.b32.xlu0 %v1284, 108
  %v1299 = vpop.permute.xlu0 %1298
  %1300 = vrot.lane.b32.xlu0 %v1286, 108
  %v1301 = vpop.permute.xlu0 %1300
  %1302 = vrot.lane.b32.xlu0 %v1288, 108
  %v1303 = vpop.permute.xlu0 %1302
  %1304 = vrot.lane.b32.xlu0 %v1290, 108
  %v1305 = vpop.permute.xlu0 %1304
  %vm1306 = vcmask 883712
  %v1307 = vsel %vm1306, %v1293, %v1295
  %v1308 = vsel %vm1306, %v1295, %v1297
  %v1309 = vsel %vm1306, %v1297, %v1299
  %v1310 = vsel %vm1306, %v1299, %v1301
  %v1311 = vsel %vm1306, %v1301, %v1303
  %v1312 = vsel %vm1306, %v1303, %v1305
  %v1314 = vsel %vm123, %v1307, 0
  %v1317 = vsel %vm123, %v1308, 0
  %v1320 = vsel %vm123, %v1309, 0
  %v1323 = vsel %vm123, %v1310, 0
  %v1326 = vsel %vm123, %v1311, 0
  %v1329 = vsel %vm123, %v1312, 0
  %1331 = vmatpush.bf16.msra.mxu0 0
  %1332 = vmatpush.bf16.msra.mxu0 0
  %1333 = vmatpush.bf16.msra.mxu0 0
  %1334 = vmatpush.bf16.msra.mxu0 0
  %1335 = vmatpush.bf16.msra.mxu0 0
  %1336 = vmatpush.bf16.msra.mxu0 0
  %1337 = vmatpush.bf16.msra.mxu0 0
  %1338 = vmatpush.bf16.msra.mxu0 %v1314
  %1339 = vmatmul.bf16.gmra.mxu0 %v239
  %v1340 = vpop.f32.mrf.mxu0
  %v1341 = vadd.f32 0.0, %v1340
  %v1342 = vpop.f32.mrf.mxu0
  %v1343 = vadd.f32 0.0, %v1342
  %1344 = vdwg.mxu0
  %1345 = vmatpush.bf16.msra.mxu0 0
  %1346 = vmatpush.bf16.msra.mxu0 0
  %1347 = vmatpush.bf16.msra.mxu0 0
  %1348 = vmatpush.bf16.msra.mxu0 0
  %1349 = vmatpush.bf16.msra.mxu0 0
  %1350 = vmatpush.bf16.msra.mxu0 0
  %1351 = vmatpush.bf16.msra.mxu0 0
  %1352 = vmatpush.bf16.msra.mxu0 %v1317
  %1353 = vmatmul.bf16.gmra.mxu0 %v239
  %v1354 = vpop.f32.mrf.mxu0
  %v1355 = vadd.f32 0.0, %v1354
  %v1356 = vpop.f32.mrf.mxu0
  %v1357 = vadd.f32 0.0, %v1356
  %1358 = vdwg.mxu0
  %1359 = vmatpush.bf16.msra.mxu0 0
  %1360 = vmatpush.bf16.msra.mxu0 0
  %1361 = vmatpush.bf16.msra.mxu0 0
  %1362 = vmatpush.bf16.msra.mxu0 0
  %1363 = vmatpush.bf16.msra.mxu0 0
  %1364 = vmatpush.bf16.msra.mxu0 0
  %1365 = vmatpush.bf16.msra.mxu0 0
  %1366 = vmatpush.bf16.msra.mxu0 %v1320
  %1367 = vmatmul.bf16.gmra.mxu0 %v239
  %v1368 = vpop.f32.mrf.mxu0
  %v1369 = vadd.f32 0.0, %v1368
  %v1370 = vpop.f32.mrf.mxu0
  %v1371 = vadd.f32 0.0, %v1370
  %1372 = vdwg.mxu0
  %1373 = vmatpush.bf16.msra.mxu0 0
  %1374 = vmatpush.bf16.msra.mxu0 0
  %1375 = vmatpush.bf16.msra.mxu0 0
  %1376 = vmatpush.bf16.msra.mxu0 0
  %1377 = vmatpush.bf16.msra.mxu0 0
  %1378 = vmatpush.bf16.msra.mxu0 0
  %1379 = vmatpush.bf16.msra.mxu0 0
  %1380 = vmatpush.bf16.msra.mxu0 %v1323
  %1381 = vmatmul.bf16.gmra.mxu0 %v239
  %v1382 = vpop.f32.mrf.mxu0
  %v1383 = vadd.f32 0.0, %v1382
  %v1384 = vpop.f32.mrf.mxu0
  %v1385 = vadd.f32 0.0, %v1384
  %1386 = vdwg.mxu0
  %1387 = vmatpush.bf16.msra.mxu0 0
  %1388 = vmatpush.bf16.msra.mxu0 0
  %1389 = vmatpush.bf16.msra.mxu0 0
  %1390 = vmatpush.bf16.msra.mxu0 0
  %1391 = vmatpush.bf16.msra.mxu0 0
  %1392 = vmatpush.bf16.msra.mxu0 0
  %1393 = vmatpush.bf16.msra.mxu0 0
  %1394 = vmatpush.bf16.msra.mxu0 %v1326
  %1395 = vmatmul.bf16.gmra.mxu0 %v239
  %v1396 = vpop.f32.mrf.mxu0
  %v1397 = vadd.f32 0.0, %v1396
  %v1398 = vpop.f32.mrf.mxu0
  %v1399 = vadd.f32 0.0, %v1398
  %1400 = vdwg.mxu0
  %1401 = vmatpush.bf16.msra.mxu0 0
  %1402 = vmatpush.bf16.msra.mxu0 0
  %1403 = vmatpush.bf16.msra.mxu0 0
  %1404 = vmatpush.bf16.msra.mxu0 0
  %1405 = vmatpush.bf16.msra.mxu0 0
  %1406 = vmatpush.bf16.msra.mxu0 0
  %1407 = vmatpush.bf16.msra.mxu0 0
  %1408 = vmatpush.bf16.msra.mxu0 %v1329
  %1409 = vmatmul.bf16.gmra.mxu0 %v239
  %v1410 = vpop.f32.mrf.mxu0
  %v1411 = vadd.f32 0.0, %v1410
  %v1412 = vpop.f32.mrf.mxu0
  %v1413 = vadd.f32 0.0, %v1412
  %1414 = vdwg.mxu0
  %1415 = vset.pattern.permute.xlu0 5
  %1416 = vperm.xlu0 %1415, %v76
  %v1417 = vpop.permute.xlu0 %1416
  %v1419 = vadd.f32 %v1341, %v1417
  %v1420 = vadd.f32 %v1355, %v1417
  %v1421 = vadd.f32 %v1369, %v1417
  %v1422 = vadd.f32 %v1383, %v1417
  %v1423 = vadd.f32 %v1397, %v1417
  %v1424 = vadd.f32 %v1411, %v1417
  %v1425 = vmul.f32 %v152, %v1419
  %v1426 = vmul.f32 %v165, %v1420
  %v1427 = vmul.f32 %v178, %v1421
  %v1428 = vmul.f32 %v191, %v1422
  %v1429 = vmul.f32 %v204, %v1423
  %v1430 = vmul.f32 %v217, %v1424
  %v1431 = vmax.f32 %v1199, %v1425
  %v1432 = vmax.f32 %v1200, %v1426
  %v1433 = vmax.f32 %v1201, %v1427
  %v1434 = vmax.f32 %v1202, %v1428
  %v1435 = vmax.f32 %v1203, %v1429
  %v1436 = vmax.f32 %v1204, %v1430
  %v1437 = vsub.f32 %v1199, %v1431
  %v1438 = vsub.f32 %v1200, %v1432
  %v1439 = vsub.f32 %v1201, %v1433
  %v1440 = vsub.f32 %v1202, %v1434
  %v1441 = vsub.f32 %v1203, %v1435
  %v1442 = vsub.f32 %v1204, %v1436
  %v1443 = vmul.f32 %v1437, 1.442695
  %v1444 = vpow.pop %v1443
  %v1445 = vmul.f32 %v1438, 1.442695
  %v1446 = vpow.pop %v1445
  %v1447 = vmul.f32 %v1439, 1.442695
  %v1448 = vpow.pop %v1447
  %v1449 = vmul.f32 %v1440, 1.442695
  %v1450 = vpow.pop %v1449
  %v1451 = vmul.f32 %v1441, 1.442695
  %v1452 = vpow.pop %v1451
  %v1453 = vmul.f32 %v1442, 1.442695
  %v1454 = vpow.pop %v1453
  %v1455 = vsub.f32 %v1425, %v1431
  %v1456 = vsub.f32 %v1426, %v1432
  %v1457 = vsub.f32 %v1427, %v1433
  %v1458 = vsub.f32 %v1428, %v1434
  %v1459 = vsub.f32 %v1429, %v1435
  %v1460 = vsub.f32 %v1430, %v1436
  %v1461 = vmul.f32 %v1455, 1.442695
  %v1462 = vpow.pop %v1461
  %v1463 = vmul.f32 %v1456, 1.442695
  %v1464 = vpow.pop %v1463
  %v1465 = vmul.f32 %v1457, 1.442695
  %v1466 = vpow.pop %v1465
  %v1467 = vmul.f32 %v1458, 1.442695
  %v1468 = vpow.pop %v1467
  %v1469 = vmul.f32 %v1459, 1.442695
  %v1470 = vpow.pop %v1469
  %v1471 = vmul.f32 %v1460, 1.442695
  %v1472 = vpow.pop %v1471
  %v1473 = vmul.f32 %v1247, %v1444
  %v1474 = vmul.f32 %v1248, %v1446
  %v1475 = vmul.f32 %v1249, %v1448
  %v1476 = vmul.f32 %v1250, %v1450
  %v1477 = vmul.f32 %v1251, %v1452
  %v1478 = vmul.f32 %v1252, %v1454
  %v1479 = vadd.f32 %v1473, %v1462
  %v1480 = vadd.f32 %v1474, %v1464
  %v1481 = vadd.f32 %v1475, %v1466
  %v1482 = vadd.f32 %v1476, %v1468
  %v1483 = vadd.f32 %v1477, %v1470
  %v1484 = vadd.f32 %v1478, %v1472
  %v1485 = vmul.f32 %v1265, %v1444
  %v1486 = vmul.f32 %v1266, %v1446
  %v1487 = vmul.f32 %v1267, %v1448
  %v1488 = vmul.f32 %v1268, %v1450
  %v1489 = vmul.f32 %v1269, %v1452
  %v1490 = vmul.f32 %v1270, %v1454
  %v1491 = vmul.f32 %v1462, %v1343
  %v1492 = vmul.f32 %v1464, %v1357
  %v1493 = vmul.f32 %v1466, %v1371
  %v1494 = vmul.f32 %v1468, %v1385
  %v1495 = vmul.f32 %v1470, %v1399
  %v1496 = vmul.f32 %v1472, %v1413
  %v1497 = vadd.f32 %v1485, %v1491
  %v1498 = vadd.f32 %v1486, %v1492
  %v1499 = vadd.f32 %v1487, %v1493
  %v1500 = vadd.f32 %v1488, %v1494
  %v1501 = vadd.f32 %v1489, %v1495
  %v1502 = vadd.f32 %v1490, %v1496
  %v1503 = vld [vmem:[#allocation2] sm:$0xff]
  %v1504 = vld [vmem:[#allocation2 + $0x8] sm:$0x3f]
  %1506 = vst [vmem:[#allocation1] ss:$4 sm:$0xff] %v1503
  %s1508 = scalar_lea.vmem [#allocation1], 32
  %1509 = vst [vmem:[%s1508] ss:$4 sm:$0xff] %v1504
  %v1510 = vld.sshfl [vmem:[#allocation1] sm:$0xff pattern:$0x73625140]
  %v1512 = vld.sshfl [vmem:[#allocation1 + $0x8] sm:$0xff pattern:$0x73625140]
  %v1514 = vld.sshfl [vmem:[#allocation1 + $0x10] sm:$0xff pattern:$0x73625140]
  %v1516 = vld.sshfl [vmem:[#allocation1 + $0x18] sm:$0xff pattern:$0x73625140]
  %v1518 = vld.sshfl [vmem:[#allocation1 + $0x20] sm:$0xff pattern:$0x73625140]
  %v1520 = vld.sshfl [vmem:[#allocation1 + $0x28] sm:$0xff pattern:$0x73625140]
  %v1522 = vld.sshfl [vmem:[#allocation1 + $0x30] sm:$0xff pattern:$0x73625140]
  %1524 = vrot.lane.b32.xlu0 %v1510, 92
  %v1525 = vpop.permute.xlu0 %1524
  %1526 = vrot.lane.b32.xlu0 %v1512, 92
  %v1527 = vpop.permute.xlu0 %1526
  %1528 = vrot.lane.b32.xlu0 %v1514, 92
  %v1529 = vpop.permute.xlu0 %1528
  %1530 = vrot.lane.b32.xlu0 %v1516, 92
  %v1531 = vpop.permute.xlu0 %1530
  %1532 = vrot.lane.b32.xlu0 %v1518, 92
  %v1533 = vpop.permute.xlu0 %1532
  %1534 = vrot.lane.b32.xlu0 %v1520, 92
  %v1535 = vpop.permute.xlu0 %1534
  %1536 = vrot.lane.b32.xlu0 %v1522, 92
  %v1537 = vpop.permute.xlu0 %1536
  %vm1538 = vcmask 752640
  %v1539 = vsel %vm1538, %v1525, %v1527
  %v1540 = vsel %vm1538, %v1527, %v1529
  %v1541 = vsel %vm1538, %v1529, %v1531
  %v1542 = vsel %vm1538, %v1531, %v1533
  %v1543 = vsel %vm1538, %v1533, %v1535
  %v1544 = vsel %vm1538, %v1535, %v1537
  %v1546 = vsel %vm123, %v1539, 0
  %v1549 = vsel %vm123, %v1540, 0
  %v1552 = vsel %vm123, %v1541, 0
  %v1555 = vsel %vm123, %v1542, 0
  %v1558 = vsel %vm123, %v1543, 0
  %v1561 = vsel %vm123, %v1544, 0
  %1563 = vmatpush.bf16.msra.mxu0 0
  %1564 = vmatpush.bf16.msra.mxu0 0
  %1565 = vmatpush.bf16.msra.mxu0 0
  %1566 = vmatpush.bf16.msra.mxu0 0
  %1567 = vmatpush.bf16.msra.mxu0 0
  %1568 = vmatpush.bf16.msra.mxu0 0
  %1569 = vmatpush.bf16.msra.mxu0 0
  %1570 = vmatpush.bf16.msra.mxu0 %v1546
  %1571 = vmatmul.bf16.gmra.mxu0 %v239
  %v1572 = vpop.f32.mrf.mxu0
  %v1573 = vadd.f32 0.0, %v1572
  %v1574 = vpop.f32.mrf.mxu0
  %v1575 = vadd.f32 0.0, %v1574
  %1576 = vdwg.mxu0
  %1577 = vmatpush.bf16.msra.mxu0 0
  %1578 = vmatpush.bf16.msra.mxu0 0
  %1579 = vmatpush.bf16.msra.mxu0 0
  %1580 = vmatpush.bf16.msra.mxu0 0
  %1581 = vmatpush.bf16.msra.mxu0 0
  %1582 = vmatpush.bf16.msra.mxu0 0
  %1583 = vmatpush.bf16.msra.mxu0 0
  %1584 = vmatpush.bf16.msra.mxu0 %v1549
  %1585 = vmatmul.bf16.gmra.mxu0 %v239
  %v1586 = vpop.f32.mrf.mxu0
  %v1587 = vadd.f32 0.0, %v1586
  %v1588 = vpop.f32.mrf.mxu0
  %v1589 = vadd.f32 0.0, %v1588
  %1590 = vdwg.mxu0
  %1591 = vmatpush.bf16.msra.mxu0 0
  %1592 = vmatpush.bf16.msra.mxu0 0
  %1593 = vmatpush.bf16.msra.mxu0 0
  %1594 = vmatpush.bf16.msra.mxu0 0
  %1595 = vmatpush.bf16.msra.mxu0 0
  %1596 = vmatpush.bf16.msra.mxu0 0
  %1597 = vmatpush.bf16.msra.mxu0 0
  %1598 = vmatpush.bf16.msra.mxu0 %v1552
  %1599 = vmatmul.bf16.gmra.mxu0 %v239
  %v1600 = vpop.f32.mrf.mxu0
  %v1601 = vadd.f32 0.0, %v1600
  %v1602 = vpop.f32.mrf.mxu0
  %v1603 = vadd.f32 0.0, %v1602
  %1604 = vdwg.mxu0
  %1605 = vmatpush.bf16.msra.mxu0 0
  %1606 = vmatpush.bf16.msra.mxu0 0
  %1607 = vmatpush.bf16.msra.mxu0 0
  %1608 = vmatpush.bf16.msra.mxu0 0
  %1609 = vmatpush.bf16.msra.mxu0 0
  %1610 = vmatpush.bf16.msra.mxu0 0
  %1611 = vmatpush.bf16.msra.mxu0 0
  %1612 = vmatpush.bf16.msra.mxu0 %v1555
  %1613 = vmatmul.bf16.gmra.mxu0 %v239
  %v1614 = vpop.f32.mrf.mxu0
  %v1615 = vadd.f32 0.0, %v1614
  %v1616 = vpop.f32.mrf.mxu0
  %v1617 = vadd.f32 0.0, %v1616
  %1618 = vdwg.mxu0
  %1619 = vmatpush.bf16.msra.mxu0 0
  %1620 = vmatpush.bf16.msra.mxu0 0
  %1621 = vmatpush.bf16.msra.mxu0 0
  %1622 = vmatpush.bf16.msra.mxu0 0
  %1623 = vmatpush.bf16.msra.mxu0 0
  %1624 = vmatpush.bf16.msra.mxu0 0
  %1625 = vmatpush.bf16.msra.mxu0 0
  %1626 = vmatpush.bf16.msra.mxu0 %v1558
  %1627 = vmatmul.bf16.gmra.mxu0 %v239
  %v1628 = vpop.f32.mrf.mxu0
  %v1629 = vadd.f32 0.0, %v1628
  %v1630 = vpop.f32.mrf.mxu0
  %v1631 = vadd.f32 0.0, %v1630
  %1632 = vdwg.mxu0
  %1633 = vmatpush.bf16.msra.mxu0 0
  %1634 = vmatpush.bf16.msra.mxu0 0
  %1635 = vmatpush.bf16.msra.mxu0 0
  %1636 = vmatpush.bf16.msra.mxu0 0
  %1637 = vmatpush.bf16.msra.mxu0 0
  %1638 = vmatpush.bf16.msra.mxu0 0
  %1639 = vmatpush.bf16.msra.mxu0 0
  %1640 = vmatpush.bf16.msra.mxu0 %v1561
  %1641 = vmatmul.bf16.gmra.mxu0 %v239
  %v1642 = vpop.f32.mrf.mxu0
  %v1643 = vadd.f32 0.0, %v1642
  %v1644 = vpop.f32.mrf.mxu0
  %v1645 = vadd.f32 0.0, %v1644
  %1646 = vdwg.mxu0
  %1647 = vset.pattern.permute.xlu0 6
  %1648 = vperm.xlu0 %1647, %v76
  %v1649 = vpop.permute.xlu0 %1648
  %v1651 = vadd.f32 %v1573, %v1649
  %v1652 = vadd.f32 %v1587, %v1649
  %v1653 = vadd.f32 %v1601, %v1649
  %v1654 = vadd.f32 %v1615, %v1649
  %v1655 = vadd.f32 %v1629, %v1649
  %v1656 = vadd.f32 %v1643, %v1649
  %v1657 = vmul.f32 %v152, %v1651
  %v1658 = vmul.f32 %v165, %v1652
  %v1659 = vmul.f32 %v178, %v1653
  %v1660 = vmul.f32 %v191, %v1654
  %v1661 = vmul.f32 %v204, %v1655
  %v1662 = vmul.f32 %v217, %v1656
  %v1663 = vmax.f32 %v1431, %v1657
  %v1664 = vmax.f32 %v1432, %v1658
  %v1665 = vmax.f32 %v1433, %v1659
  %v1666 = vmax.f32 %v1434, %v1660
  %v1667 = vmax.f32 %v1435, %v1661
  %v1668 = vmax.f32 %v1436, %v1662
  %v1669 = vsub.f32 %v1431, %v1663
  %v1670 = vsub.f32 %v1432, %v1664
  %v1671 = vsub.f32 %v1433, %v1665
  %v1672 = vsub.f32 %v1434, %v1666
  %v1673 = vsub.f32 %v1435, %v1667
  %v1674 = vsub.f32 %v1436, %v1668
  %v1675 = vmul.f32 %v1669, 1.442695
  %v1676 = vpow.pop %v1675
  %v1677 = vmul.f32 %v1670, 1.442695
  %v1678 = vpow.pop %v1677
  %v1679 = vmul.f32 %v1671, 1.442695
  %v1680 = vpow.pop %v1679
  %v1681 = vmul.f32 %v1672, 1.442695
  %v1682 = vpow.pop %v1681
  %v1683 = vmul.f32 %v1673, 1.442695
  %v1684 = vpow.pop %v1683
  %v1685 = vmul.f32 %v1674, 1.442695
  %v1686 = vpow.pop %v1685
  %v1687 = vsub.f32 %v1657, %v1663
  %v1688 = vsub.f32 %v1658, %v1664
  %v1689 = vsub.f32 %v1659, %v1665
  %v1690 = vsub.f32 %v1660, %v1666
  %v1691 = vsub.f32 %v1661, %v1667
  %v1692 = vsub.f32 %v1662, %v1668
  %v1693 = vmul.f32 %v1687, 1.442695
  %v1694 = vpow.pop %v1693
  %v1695 = vmul.f32 %v1688, 1.442695
  %v1696 = vpow.pop %v1695
  %v1697 = vmul.f32 %v1689, 1.442695
  %v1698 = vpow.pop %v1697
  %v1699 = vmul.f32 %v1690, 1.442695
  %v1700 = vpow.pop %v1699
  %v1701 = vmul.f32 %v1691, 1.442695
  %v1702 = vpow.pop %v1701
  %v1703 = vmul.f32 %v1692, 1.442695
  %v1704 = vpow.pop %v1703
  %v1705 = vmul.f32 %v1479, %v1676
  %v1706 = vmul.f32 %v1480, %v1678
  %v1707 = vmul.f32 %v1481, %v1680
  %v1708 = vmul.f32 %v1482, %v1682
  %v1709 = vmul.f32 %v1483, %v1684
  %v1710 = vmul.f32 %v1484, %v1686
  %v1711 = vadd.f32 %v1705, %v1694
  %v1712 = vadd.f32 %v1706, %v1696
  %v1713 = vadd.f32 %v1707, %v1698
  %v1714 = vadd.f32 %v1708, %v1700
  %v1715 = vadd.f32 %v1709, %v1702
  %v1716 = vadd.f32 %v1710, %v1704
  %v1717 = vmul.f32 %v1497, %v1676
  %v1718 = vmul.f32 %v1498, %v1678
  %v1719 = vmul.f32 %v1499, %v1680
  %v1720 = vmul.f32 %v1500, %v1682
  %v1721 = vmul.f32 %v1501, %v1684
  %v1722 = vmul.f32 %v1502, %v1686
  %v1723 = vmul.f32 %v1694, %v1575
  %v1724 = vmul.f32 %v1696, %v1589
  %v1725 = vmul.f32 %v1698, %v1603
  %v1726 = vmul.f32 %v1700, %v1617
  %v1727 = vmul.f32 %v1702, %v1631
  %v1728 = vmul.f32 %v1704, %v1645
  %v1729 = vadd.f32 %v1717, %v1723
  %v1730 = vadd.f32 %v1718, %v1724
  %v1731 = vadd.f32 %v1719, %v1725
  %v1732 = vadd.f32 %v1720, %v1726
  %v1733 = vadd.f32 %v1721, %v1727
  %v1734 = vadd.f32 %v1722, %v1728
  %v1735 = vld [vmem:[#allocation2] sm:$0xff]
  %v1736 = vld [vmem:[#allocation2 + $0x8] sm:$0x3f]
  %1738 = vst [vmem:[#allocation1] ss:$4 sm:$0xff] %v1735
  %s1740 = scalar_lea.vmem [#allocation1], 32
  %1741 = vst [vmem:[%s1740] ss:$4 sm:$0xff] %v1736
  %v1742 = vld.sshfl [vmem:[#allocation1] sm:$0xff pattern:$0x73625140]
  %v1744 = vld.sshfl [vmem:[#allocation1 + $0x8] sm:$0xff pattern:$0x73625140]
  %v1746 = vld.sshfl [vmem:[#allocation1 + $0x10] sm:$0xff pattern:$0x73625140]
  %v1748 = vld.sshfl [vmem:[#allocation1 + $0x18] sm:$0xff pattern:$0x73625140]
  %v1750 = vld.sshfl [vmem:[#allocation1 + $0x20] sm:$0xff pattern:$0x73625140]
  %v1752 = vld.sshfl [vmem:[#allocation1 + $0x28] sm:$0xff pattern:$0x73625140]
  %v1754 = vld.sshfl [vmem:[#allocation1 + $0x30] sm:$0xff pattern:$0x73625140]
  %1756 = vrot.lane.b32.xlu0 %v1742, 91
  %v1757 = vpop.permute.xlu0 %1756
  %1758 = vrot.lane.b32.xlu0 %v1744, 91
  %v1759 = vpop.permute.xlu0 %1758
  %1760 = vrot.lane.b32.xlu0 %v1746, 91
  %v1761 = vpop.permute.xlu0 %1760
  %1762 = vrot.lane.b32.xlu0 %v1748, 91
  %v1763 = vpop.permute.xlu0 %1762
  %1764 = vrot.lane.b32.xlu0 %v1750, 91
  %v1765 = vpop.permute.xlu0 %1764
  %1766 = vrot.lane.b32.xlu0 %v1752, 91
  %v1767 = vpop.permute.xlu0 %1766
  %1768 = vrot.lane.b32.xlu0 %v1754, 91
  %v1769 = vpop.permute.xlu0 %1768
  %vm1770 = vcmask 744448
  %v1771 = vsel %vm1770, %v1757, %v1759
  %v1772 = vsel %vm1770, %v1759, %v1761
  %v1773 = vsel %vm1770, %v1761, %v1763
  %v1774 = vsel %vm1770, %v1763, %v1765
  %v1775 = vsel %vm1770, %v1765, %v1767
  %v1776 = vsel %vm1770, %v1767, %v1769
  %v1778 = vsel %vm123, %v1771, 0
  %v1781 = vsel %vm123, %v1772, 0
  %v1784 = vsel %vm123, %v1773, 0
  %v1787 = vsel %vm123, %v1774, 0
  %v1790 = vsel %vm123, %v1775, 0
  %v1793 = vsel %vm123, %v1776, 0
  %1795 = vmatpush.bf16.msra.mxu0 0
  %1796 = vmatpush.bf16.msra.mxu0 0
  %1797 = vmatpush.bf16.msra.mxu0 0
  %1798 = vmatpush.bf16.msra.mxu0 0
  %1799 = vmatpush.bf16.msra.mxu0 0
  %1800 = vmatpush.bf16.msra.mxu0 0
  %1801 = vmatpush.bf16.msra.mxu0 0
  %1802 = vmatpush.bf16.msra.mxu0 %v1778
  %1803 = vmatmul.bf16.gmra.mxu0 %v239
  %v1804 = vpop.f32.mrf.mxu0
  %v1805 = vadd.f32 0.0, %v1804
  %v1806 = vpop.f32.mrf.mxu0
  %v1807 = vadd.f32 0.0, %v1806
  %1808 = vdwg.mxu0
  %1809 = vmatpush.bf16.msra.mxu0 0
  %1810 = vmatpush.bf16.msra.mxu0 0
  %1811 = vmatpush.bf16.msra.mxu0 0
  %1812 = vmatpush.bf16.msra.mxu0 0
  %1813 = vmatpush.bf16.msra.mxu0 0
  %1814 = vmatpush.bf16.msra.mxu0 0
  %1815 = vmatpush.bf16.msra.mxu0 0
  %1816 = vmatpush.bf16.msra.mxu0 %v1781
  %1817 = vmatmul.bf16.gmra.mxu0 %v239
  %v1818 = vpop.f32.mrf.mxu0
  %v1819 = vadd.f32 0.0, %v1818
  %v1820 = vpop.f32.mrf.mxu0
  %v1821 = vadd.f32 0.0, %v1820
  %1822 = vdwg.mxu0
  %1823 = vmatpush.bf16.msra.mxu0 0
  %1824 = vmatpush.bf16.msra.mxu0 0
  %1825 = vmatpush.bf16.msra.mxu0 0
  %1826 = vmatpush.bf16.msra.mxu0 0
  %1827 = vmatpush.bf16.msra.mxu0 0
  %1828 = vmatpush.bf16.msra.mxu0 0
  %1829 = vmatpush.bf16.msra.mxu0 0
  %1830 = vmatpush.bf16.msra.mxu0 %v1784
  %1831 = vmatmul.bf16.gmra.mxu0 %v239
  %v1832 = vpop.f32.mrf.mxu0
  %v1833 = vadd.f32 0.0, %v1832
  %v1834 = vpop.f32.mrf.mxu0
  %v1835 = vadd.f32 0.0, %v1834
  %1836 = vdwg.mxu0
  %1837 = vmatpush.bf16.msra.mxu0 0
  %1838 = vmatpush.bf16.msra.mxu0 0
  %1839 = vmatpush.bf16.msra.mxu0 0
  %1840 = vmatpush.bf16.msra.mxu0 0
  %1841 = vmatpush.bf16.msra.mxu0 0
  %1842 = vmatpush.bf16.msra.mxu0 0
  %1843 = vmatpush.bf16.msra.mxu0 0
  %1844 = vmatpush.bf16.msra.mxu0 %v1787
  %1845 = vmatmul.bf16.gmra.mxu0 %v239
  %v1846 = vpop.f32.mrf.mxu0
  %v1847 = vadd.f32 0.0, %v1846
  %v1848 = vpop.f32.mrf.mxu0
  %v1849 = vadd.f32 0.0, %v1848
  %1850 = vdwg.mxu0
  %1851 = vmatpush.bf16.msra.mxu0 0
  %1852 = vmatpush.bf16.msra.mxu0 0
  %1853 = vmatpush.bf16.msra.mxu0 0
  %1854 = vmatpush.bf16.msra.mxu0 0
  %1855 = vmatpush.bf16.msra.mxu0 0
  %1856 = vmatpush.bf16.msra.mxu0 0
  %1857 = vmatpush.bf16.msra.mxu0 0
  %1858 = vmatpush.bf16.msra.mxu0 %v1790
  %1859 = vmatmul.bf16.gmra.mxu0 %v239
  %v1860 = vpop.f32.mrf.mxu0
  %v1861 = vadd.f32 0.0, %v1860
  %v1862 = vpop.f32.mrf.mxu0
  %v1863 = vadd.f32 0.0, %v1862
  %1864 = vdwg.mxu0
  %1865 = vmatpush.bf16.msra.mxu0 0
  %1866 = vmatpush.bf16.msra.mxu0 0
  %1867 = vmatpush.bf16.msra.mxu0 0
  %1868 = vmatpush.bf16.msra.mxu0 0
  %1869 = vmatpush.bf16.msra.mxu0 0
  %1870 = vmatpush.bf16.msra.mxu0 0
  %1871 = vmatpush.bf16.msra.mxu0 0
  %1872 = vmatpush.bf16.msra.mxu0 %v1793
  %1873 = vmatmul.bf16.gmra.mxu0 %v239
  %v1874 = vpop.f32.mrf.mxu0
  %v1875 = vadd.f32 0.0, %v1874
  %v1876 = vpop.f32.mrf.mxu0
  %v1877 = vadd.f32 0.0, %v1876
  %1878 = vdwg.mxu0
  %1879 = vset.pattern.permute.xlu0 7
  %1880 = vperm.xlu0 %1879, %v76
  %v1881 = vpop.permute.xlu0 %1880
  %v1883 = vadd.f32 %v1805, %v1881
  %v1884 = vadd.f32 %v1819, %v1881
  %v1885 = vadd.f32 %v1833, %v1881
  %v1886 = vadd.f32 %v1847, %v1881
  %v1887 = vadd.f32 %v1861, %v1881
  %v1888 = vadd.f32 %v1875, %v1881
  %v1889 = vmul.f32 %v152, %v1883
  %v1890 = vmul.f32 %v165, %v1884
  %v1891 = vmul.f32 %v178, %v1885
  %v1892 = vmul.f32 %v191, %v1886
  %v1893 = vmul.f32 %v204, %v1887
  %v1894 = vmul.f32 %v217, %v1888
  %v1895 = vmax.f32 %v1663, %v1889
  %v1896 = vmax.f32 %v1664, %v1890
  %v1897 = vmax.f32 %v1665, %v1891
  %v1898 = vmax.f32 %v1666, %v1892
  %v1899 = vmax.f32 %v1667, %v1893
  %v1900 = vmax.f32 %v1668, %v1894
  %v1901 = vsub.f32 %v1663, %v1895
  %v1902 = vsub.f32 %v1664, %v1896
  %v1903 = vsub.f32 %v1665, %v1897
  %v1904 = vsub.f32 %v1666, %v1898
  %v1905 = vsub.f32 %v1667, %v1899
  %v1906 = vsub.f32 %v1668, %v1900
  %v1907 = vmul.f32 %v1901, 1.442695
  %v1908 = vpow.pop %v1907
  %v1909 = vmul.f32 %v1902, 1.442695
  %v1910 = vpow.pop %v1909
  %v1911 = vmul.f32 %v1903, 1.442695
  %v1912 = vpow.pop %v1911
  %v1913 = vmul.f32 %v1904, 1.442695
  %v1914 = vpow.pop %v1913
  %v1915 = vmul.f32 %v1905, 1.442695
  %v1916 = vpow.pop %v1915
  %v1917 = vmul.f32 %v1906, 1.442695
  %v1918 = vpow.pop %v1917
  %v1919 = vsub.f32 %v1889, %v1895
  %v1920 = vsub.f32 %v1890, %v1896
  %v1921 = vsub.f32 %v1891, %v1897
  %v1922 = vsub.f32 %v1892, %v1898
  %v1923 = vsub.f32 %v1893, %v1899
  %v1924 = vsub.f32 %v1894, %v1900
  %v1925 = vmul.f32 %v1919, 1.442695
  %v1926 = vpow.pop %v1925
  %v1927 = vmul.f32 %v1920, 1.442695
  %v1928 = vpow.pop %v1927
  %v1929 = vmul.f32 %v1921, 1.442695
  %v1930 = vpow.pop %v1929
  %v1931 = vmul.f32 %v1922, 1.442695
  %v1932 = vpow.pop %v1931
  %v1933 = vmul.f32 %v1923, 1.442695
  %v1934 = vpow.pop %v1933
  %v1935 = vmul.f32 %v1924, 1.442695
  %v1936 = vpow.pop %v1935
  %v1937 = vmul.f32 %v1711, %v1908
  %v1938 = vmul.f32 %v1712, %v1910
  %v1939 = vmul.f32 %v1713, %v1912
  %v1940 = vmul.f32 %v1714, %v1914
  %v1941 = vmul.f32 %v1715, %v1916
  %v1942 = vmul.f32 %v1716, %v1918
  %v1943 = vadd.f32 %v1937, %v1926
  %v1944 = vadd.f32 %v1938, %v1928
  %v1945 = vadd.f32 %v1939, %v1930
  %v1946 = vadd.f32 %v1940, %v1932
  %v1947 = vadd.f32 %v1941, %v1934
  %v1948 = vadd.f32 %v1942, %v1936
  %v1949 = vmul.f32 %v1729, %v1908
  %v1950 = vmul.f32 %v1730, %v1910
  %v1951 = vmul.f32 %v1731, %v1912
  %v1952 = vmul.f32 %v1732, %v1914
  %v1953 = vmul.f32 %v1733, %v1916
  %v1954 = vmul.f32 %v1734, %v1918
  %v1955 = vmul.f32 %v1926, %v1807
  %v1956 = vmul.f32 %v1928, %v1821
  %v1957 = vmul.f32 %v1930, %v1835
  %v1958 = vmul.f32 %v1932, %v1849
  %v1959 = vmul.f32 %v1934, %v1863
  %v1960 = vmul.f32 %v1936, %v1877
  %v1961 = vadd.f32 %v1949, %v1955
  %v1962 = vadd.f32 %v1950, %v1956
  %v1963 = vadd.f32 %v1951, %v1957
  %v1964 = vadd.f32 %v1952, %v1958
  %v1965 = vadd.f32 %v1953, %v1959
  %v1966 = vadd.f32 %v1954, %v1960
  %v1967 = vld [vmem:[#allocation2] sm:$0xff]
  %v1968 = vld [vmem:[#allocation2 + $0x8] sm:$0x3f]
  %1970 = vst [vmem:[#allocation1] ss:$4 sm:$0xff] %v1967
  %s1972 = scalar_lea.vmem [#allocation1], 32
  %1973 = vst [vmem:[%s1972] ss:$4 sm:$0xff] %v1968
  %v1974 = vld.sshfl [vmem:[#allocation1] sm:$0xff pattern:$0x73625140]
  %v1976 = vld.sshfl [vmem:[#allocation1 + $0x8] sm:$0xff pattern:$0x73625140]
  %v1978 = vld.sshfl [vmem:[#allocation1 + $0x10] sm:$0xff pattern:$0x73625140]
  %v1980 = vld.sshfl [vmem:[#allocation1 + $0x18] sm:$0xff pattern:$0x73625140]
  %v1982 = vld.sshfl [vmem:[#allocation1 + $0x20] sm:$0xff pattern:$0x73625140]
  %v1984 = vld.sshfl [vmem:[#allocation1 + $0x28] sm:$0xff pattern:$0x73625140]
  %v1986 = vld.sshfl [vmem:[#allocation1 + $0x30] sm:$0xff pattern:$0x73625140]
  %1988 = vrot.lane.b32.xlu0 %v1974, 90
  %v1989 = vpop.permute.xlu0 %1988
  %1990 = vrot.lane.b32.xlu0 %v1976, 90
  %v1991 = vpop.permute.xlu0 %1990
  %1992 = vrot.lane.b32.xlu0 %v1978, 90
  %v1993 = vpop.permute.xlu0 %1992
  %1994 = vrot.lane.b32.xlu0 %v1980, 90
  %v1995 = vpop.permute.xlu0 %1994
  %1996 = vrot.lane.b32.xlu0 %v1982, 90
  %v1997 = vpop.permute.xlu0 %1996
  %1998 = vrot.lane.b32.xlu0 %v1984, 90
  %v1999 = vpop.permute.xlu0 %1998
  %2000 = vrot.lane.b32.xlu0 %v1986, 90
  %v2001 = vpop.permute.xlu0 %2000
  %vm2002 = vcmask 736256
  %v2003 = vsel %vm2002, %v1989, %v1991
  %v2004 = vsel %vm2002, %v1991, %v1993
  %v2005 = vsel %vm2002, %v1993, %v1995
  %v2006 = vsel %vm2002, %v1995, %v1997
  %v2007 = vsel %vm2002, %v1997, %v1999
  %v2008 = vsel %vm2002, %v1999, %v2001
  %v2010 = vsel %vm123, %v2003, 0
  %v2013 = vsel %vm123, %v2004, 0
  %v2016 = vsel %vm123, %v2005, 0
  %v2019 = vsel %vm123, %v2006, 0
  %v2022 = vsel %vm123, %v2007, 0
  %v2025 = vsel %vm123, %v2008, 0
  %2027 = vmatpush.bf16.msra.mxu0 0
  %2028 = vmatpush.bf16.msra.mxu0 0
  %2029 = vmatpush.bf16.msra.mxu0 0
  %2030 = vmatpush.bf16.msra.mxu0 0
  %2031 = vmatpush.bf16.msra.mxu0 0
  %2032 = vmatpush.bf16.msra.mxu0 0
  %2033 = vmatpush.bf16.msra.mxu0 0
  %2034 = vmatpush.bf16.msra.mxu0 %v2010
  %2035 = vmatmul.bf16.gmra.mxu0 %v239
  %v2036 = vpop.f32.mrf.mxu0
  %v2037 = vadd.f32 0.0, %v2036
  %v2038 = vpop.f32.mrf.mxu0
  %v2039 = vadd.f32 0.0, %v2038
  %2040 = vdwg.mxu0
  %2041 = vmatpush.bf16.msra.mxu0 0
  %2042 = vmatpush.bf16.msra.mxu0 0
  %2043 = vmatpush.bf16.msra.mxu0 0
  %2044 = vmatpush.bf16.msra.mxu0 0
  %2045 = vmatpush.bf16.msra.mxu0 0
  %2046 = vmatpush.bf16.msra.mxu0 0
  %2047 = vmatpush.bf16.msra.mxu0 0
  %2048 = vmatpush.bf16.msra.mxu0 %v2013
  %2049 = vmatmul.bf16.gmra.mxu0 %v239
  %v2050 = vpop.f32.mrf.mxu0
  %v2051 = vadd.f32 0.0, %v2050
  %v2052 = vpop.f32.mrf.mxu0
  %v2053 = vadd.f32 0.0, %v2052
  %2054 = vdwg.mxu0
  %2055 = vmatpush.bf16.msra.mxu0 0
  %2056 = vmatpush.bf16.msra.mxu0 0
  %2057 = vmatpush.bf16.msra.mxu0 0
  %2058 = vmatpush.bf16.msra.mxu0 0
  %2059 = vmatpush.bf16.msra.mxu0 0
  %2060 = vmatpush.bf16.msra.mxu0 0
  %2061 = vmatpush.bf16.msra.mxu0 0
  %2062 = vmatpush.bf16.msra.mxu0 %v2016
  %2063 = vmatmul.bf16.gmra.mxu0 %v239
  %v2064 = vpop.f32.mrf.mxu0
  %v2065 = vadd.f32 0.0, %v2064
  %v2066 = vpop.f32.mrf.mxu0
  %v2067 = vadd.f32 0.0, %v2066
  %2068 = vdwg.mxu0
  %2069 = vmatpush.bf16.msra.mxu0 0
  %2070 = vmatpush.bf16.msra.mxu0 0
  %2071 = vmatpush.bf16.msra.mxu0 0
  %2072 = vmatpush.bf16.msra.mxu0 0
  %2073 = vmatpush.bf16.msra.mxu0 0
  %2074 = vmatpush.bf16.msra.mxu0 0
  %2075 = vmatpush.bf16.msra.mxu0 0
  %2076 = vmatpush.bf16.msra.mxu0 %v2019
  %2077 = vmatmul.bf16.gmra.mxu0 %v239
  %v2078 = vpop.f32.mrf.mxu0
  %v2079 = vadd.f32 0.0, %v2078
  %v2080 = vpop.f32.mrf.mxu0
  %v2081 = vadd.f32 0.0, %v2080
  %2082 = vdwg.mxu0
  %2083 = vmatpush.bf16.msra.mxu0 0
  %2084 = vmatpush.bf16.msra.mxu0 0
  %2085 = vmatpush.bf16.msra.mxu0 0
  %2086 = vmatpush.bf16.msra.mxu0 0
  %2087 = vmatpush.bf16.msra.mxu0 0
  %2088 = vmatpush.bf16.msra.mxu0 0
  %2089 = vmatpush.bf16.msra.mxu0 0
  %2090 = vmatpush.bf16.msra.mxu0 %v2022
  %2091 = vmatmul.bf16.gmra.mxu0 %v239
  %v2092 = vpop.f32.mrf.mxu0
  %v2093 = vadd.f32 0.0, %v2092
  %v2094 = vpop.f32.mrf.mxu0
  %v2095 = vadd.f32 0.0, %v2094
  %2096 = vdwg.mxu0
  %2097 = vmatpush.bf16.msra.mxu0 0
  %2098 = vmatpush.bf16.msra.mxu0 0
  %2099 = vmatpush.bf16.msra.mxu0 0
  %2100 = vmatpush.bf16.msra.mxu0 0
  %2101 = vmatpush.bf16.msra.mxu0 0
  %2102 = vmatpush.bf16.msra.mxu0 0
  %2103 = vmatpush.bf16.msra.mxu0 0
  %2104 = vmatpush.bf16.msra.mxu0 %v2025
  %2105 = vmatmul.bf16.gmra.mxu0 %v239
  %v2106 = vpop.f32.mrf.mxu0
  %v2107 = vadd.f32 0.0, %v2106
  %v2108 = vpop.f32.mrf.mxu0
  %v2109 = vadd.f32 0.0, %v2108
  %2110 = vdwg.mxu0
  %2111 = vset.pattern.permute.xlu0 8
  %2112 = vperm.xlu0 %2111, %v76
  %v2113 = vpop.permute.xlu0 %2112
  %v2115 = vadd.f32 %v2037, %v2113
  %v2116 = vadd.f32 %v2051, %v2113
  %v2117 = vadd.f32 %v2065, %v2113
  %v2118 = vadd.f32 %v2079, %v2113
  %v2119 = vadd.f32 %v2093, %v2113
  %v2120 = vadd.f32 %v2107, %v2113
  %v2121 = vmul.f32 %v152, %v2115
  %v2122 = vmul.f32 %v165, %v2116
  %v2123 = vmul.f32 %v178, %v2117
  %v2124 = vmul.f32 %v191, %v2118
  %v2125 = vmul.f32 %v204, %v2119
  %v2126 = vmul.f32 %v217, %v2120
  %v2127 = vmax.f32 %v1895, %v2121
  %v2128 = vmax.f32 %v1896, %v2122
  %v2129 = vmax.f32 %v1897, %v2123
  %v2130 = vmax.f32 %v1898, %v2124
  %v2131 = vmax.f32 %v1899, %v2125
  %v2132 = vmax.f32 %v1900, %v2126
  %v2133 = vsub.f32 %v1895, %v2127
  %v2134 = vsub.f32 %v1896, %v2128
  %v2135 = vsub.f32 %v1897, %v2129
  %v2136 = vsub.f32 %v1898, %v2130
  %v2137 = vsub.f32 %v1899, %v2131
  %v2138 = vsub.f32 %v1900, %v2132
  %v2139 = vmul.f32 %v2133, 1.442695
  %v2140 = vpow.pop %v2139
  %v2141 = vmul.f32 %v2134, 1.442695
  %v2142 = vpow.pop %v2141
  %v2143 = vmul.f32 %v2135, 1.442695
  %v2144 = vpow.pop %v2143
  %v2145 = vmul.f32 %v2136, 1.442695
  %v2146 = vpow.pop %v2145
  %v2147 = vmul.f32 %v2137, 1.442695
  %v2148 = vpow.pop %v2147
  %v2149 = vmul.f32 %v2138, 1.442695
  %v2150 = vpow.pop %v2149
  %v2151 = vsub.f32 %v2121, %v2127
  %v2152 = vsub.f32 %v2122, %v2128
  %v2153 = vsub.f32 %v2123, %v2129
  %v2154 = vsub.f32 %v2124, %v2130
  %v2155 = vsub.f32 %v2125, %v2131
  %v2156 = vsub.f32 %v2126, %v2132
  %v2157 = vmul.f32 %v2151, 1.442695
  %v2158 = vpow.pop %v2157
  %v2159 = vmul.f32 %v2152, 1.442695
  %v2160 = vpow.pop %v2159
  %v2161 = vmul.f32 %v2153, 1.442695
  %v2162 = vpow.pop %v2161
  %v2163 = vmul.f32 %v2154, 1.442695
  %v2164 = vpow.pop %v2163
  %v2165 = vmul.f32 %v2155, 1.442695
  %v2166 = vpow.pop %v2165
  %v2167 = vmul.f32 %v2156, 1.442695
  %v2168 = vpow.pop %v2167
  %v2169 = vmul.f32 %v1943, %v2140
  %v2170 = vmul.f32 %v1944, %v2142
  %v2171 = vmul.f32 %v1945, %v2144
  %v2172 = vmul.f32 %v1946, %v2146
  %v2173 = vmul.f32 %v1947, %v2148
  %v2174 = vmul.f32 %v1948, %v2150
  %v2175 = vadd.f32 %v2169, %v2158
  %v2176 = vadd.f32 %v2170, %v2160
  %v2177 = vadd.f32 %v2171, %v2162
  %v2178 = vadd.f32 %v2172, %v2164
  %v2179 = vadd.f32 %v2173, %v2166
  %v2180 = vadd.f32 %v2174, %v2168
  %v2181 = vmul.f32 %v1961, %v2140
  %v2182 = vmul.f32 %v1962, %v2142
  %v2183 = vmul.f32 %v1963, %v2144
  %v2184 = vmul.f32 %v1964, %v2146
  %v2185 = vmul.f32 %v1965, %v2148
  %v2186 = vmul.f32 %v1966, %v2150
  %v2187 = vmul.f32 %v2158, %v2039
  %v2188 = vmul.f32 %v2160, %v2053
  %v2189 = vmul.f32 %v2162, %v2067
  %v2190 = vmul.f32 %v2164, %v2081
  %v2191 = vmul.f32 %v2166, %v2095
  %v2192 = vmul.f32 %v2168, %v2109
  %v2193 = vadd.f32 %v2181, %v2187
  %v2194 = vadd.f32 %v2182, %v2188
  %v2195 = vadd.f32 %v2183, %v2189
  %v2196 = vadd.f32 %v2184, %v2190
  %v2197 = vadd.f32 %v2185, %v2191
  %v2198 = vadd.f32 %v2186, %v2192
  %v2199 = vrcp.pop %v2175
  %v2200 = vrcp.pop %v2176
  %v2201 = vrcp.pop %v2177
  %v2202 = vrcp.pop %v2178
  %v2203 = vrcp.pop %v2179
  %v2204 = vrcp.pop %v2180
  %v2205 = vmul.f32 %v2193, %v2199
  %v2206 = vmul.f32 %v2194, %v2200
  %v2207 = vmul.f32 %v2195, %v2201
  %v2208 = vmul.f32 %v2196, %v2202
  %v2209 = vmul.f32 %v2197, %v2203
  %v2210 = vmul.f32 %v2198, %v2204
  %2211 = vst [vmem:[%s5] sm:$0xff] %v2205
  %2212 = vst [vmem:[%s5 + $0x8] sm:$0xff] %v2206
  %2213 = vst [vmem:[%s5 + $0x10] sm:$0xff] %v2207
  %2214 = vst [vmem:[%s5 + $0x18] sm:$0xff] %v2208
  %2215 = vst [vmem:[%s5 + $0x20] sm:$0xff] %v2209
  %2216 = vst [vmem:[%s5 + $0x28] sm:$0xff] %v2210
  // Predicated region
  $region52: #{_lambda_.1} parent=0 // pred_check
    _
  $region53: #{_lambda_.1} parent=0 // pred_check_branch
    %2218 = sbr.rel (0) target = $region55
  $region54: #{_lambda_.1} parent=0 // pred_region
    _
  $region55: #{_lambda_.1} parent=0 // pred_fallthru
    _
  // Predicated region
  $region56: #{_lambda_.1} parent=0 // pred_check
    _
  $region57: #{_lambda_.1} parent=0 // pred_check_branch
    %2220 = sbr.rel (0) target = $region59
  $region58: #{_lambda_.1} parent=0 // pred_region
    _
  $region59: #{_lambda_.1} parent=0 // pred_fallthru
    _
  %2221 = vsyncmov [#allocation4]
  %s2222 = vpop.sfrf %2221
  %p2223 = scmp.eq.s32.totalorder %s2222, 0
  %p2224 = pneg %p2223
  %2226 = shalt.err (%p2224)

</llo_original>
